<compile_context>
chip_gen: v7x
topology: tpu7x:2x2x1
jax: 0.10.0
libtpu: 0.0.40
codegen_flags: <defaults>
</compile_context>

<pallas_src>
import math
import jax
import jax.numpy as jnp
from jax import lax
from jax.experimental import pallas as pl
from jax.experimental.pallas import tpu as pltpu

N_HEAD = 4       # config.n_head
Q_TILE = 128     # query-row tile (clamped to T)


def _layernorm(x, gamma, beta, eps=1e-5):
    mu = jnp.mean(x, axis=-1, keepdims=True)
    var = jnp.mean((x - mu) ** 2, axis=-1, keepdims=True)
    return (x - mu) * lax.rsqrt(var + eps) * gamma + beta


def _gelu(x):
    # tanh-approximation GELU, exactly as in the reference `gelu`
    return 0.5 * x * (1.0 + jnp.tanh(math.sqrt(2.0 / math.pi)
                                     * (x + 0.044715 * x ** 3)))


def block_kernel(xq_ref, xf_ref,
                 ln1g_ref, ln1b_ref,
                 wq_ref, bq_ref, wkv_ref, bkv_ref,
                 wproj_ref, bproj_ref,
                 ln2g_ref, ln2b_ref,
                 wfc_ref, bfc_ref, wfcp_ref, bfcp_ref,
                 out_ref):
    TQ, C = xq_ref.shape[1], xq_ref.shape[2]
    T = xf_ref.shape[1]
    nh = N_HEAD
    hd = C // nh
    qi = pl.program_id(1)                       # which query-row tile

    x_q = xq_ref[0]                             # (TQ, C) residual rows (f32)
    x_f = xf_ref[0]                             # (T,  C) full sequence (for K/V)

    # ---------------- attention branch ----------------
    # LayerNorm in f32; matmul operands in bf16, accumulation in f32.
    h_q = _layernorm(x_q, ln1g_ref[0], ln1b_ref[0])
    h_f = _layernorm(x_f, ln1g_ref[0], ln1b_ref[0])

    q = jnp.dot(h_q.astype(jnp.bfloat16), wq_ref[...],
                preferred_element_type=jnp.float32) + bq_ref[0]        # (TQ, C)
    kv = jnp.dot(h_f.astype(jnp.bfloat16), wkv_ref[...],
                 preferred_element_type=jnp.float32) + bkv_ref[0]      # (T, 2C)
    k = kv[:, 0:C]
    v = kv[:, C:2 * C]

    # Causal mask, hoisted out of the head loop (built once per program);
    # query rows are offset by the tile index to get global positions.
    row = qi * TQ + lax.broadcasted_iota(jnp.int32, (TQ, T), 0)
    col = lax.broadcasted_iota(jnp.int32, (TQ, T), 1)
    causal = col <= row

    inv_sqrt_hd = 1.0 / math.sqrt(hd)
    attn_out = jnp.zeros((TQ, C), jnp.float32)
    for hh in range(nh):                        # static, unrolled head loop
        sl = slice(hh * hd, (hh + 1) * hd)
        qh = q[:, sl].astype(jnp.bfloat16)      # (TQ, hd)
        kh = k[:, sl].astype(jnp.bfloat16)      # (T,  hd)
        vh = v[:, sl].astype(jnp.bfloat16)      # (T,  hd)

        # q @ k^T via dimension_numbers contracting the last dims:
        # no XLU transpose of k is materialized.
        s = lax.dot_general(qh, kh, (((1,), (1,)), ((), ())),
                            preferred_element_type=jnp.float32)        # (TQ, T)
        s = s * inv_sqrt_hd
        s = jnp.where(causal, s, -jnp.inf)
        s = s - jnp.max(s, axis=-1, keepdims=True)   # diagonal unmasked -> finite
        p = jnp.exp(s)
        # softmax normalization on the EUP (approx reciprocal) instead of a divide
        p = p * pl.reciprocal(jnp.sum(p, axis=-1, keepdims=True), approx=True)

        y_h = jnp.dot(p.astype(jnp.bfloat16), vh,
                      preferred_element_type=jnp.float32)              # (TQ, hd)
        # Fold this head directly into the output projection: no concatenate.
        attn_out = attn_out + jnp.dot(y_h.astype(jnp.bfloat16), wproj_ref[hh],
                                      preferred_element_type=jnp.float32)

    x_res = x_q + attn_out + bproj_ref[0]       # residual add (f32)

    # ---------------- MLP branch ----------------
    h2 = _layernorm(x_res, ln2g_ref[0], ln2b_ref[0])
    m = jnp.dot(h2.astype(jnp.bfloat16), wfc_ref[...],
                preferred_element_type=jnp.float32) + bfc_ref[0]       # (TQ, 4C)
    m = _gelu(m)                                                       # f32
    m = jnp.dot(m.astype(jnp.bfloat16), wfcp_ref[...],
                preferred_element_type=jnp.float32) + bfcp_ref[0]      # (TQ, C)

    out_ref[0] = (x_res + m).astype(out_ref.dtype)


def gpt_block(x, params, *, q_tile=Q_TILE):
    """x: (B, T, C) float32.  params: dict of f32 weights (see init_params)."""
    B, T, C = x.shape
    nh, hd = N_HEAD, C // N_HEAD
    TQ = min(q_tile, T)
    assert T % TQ == 0, "sequence length must be a multiple of the query tile"
    n_qt = T // TQ

    bf16 = jnp.bfloat16
    # Matmul weights in bf16 (MXU-native); biases / LayerNorm params stay f32.
    w_attn = params["w_attn"]
    b_attn = params["b_attn"]
    w_q = w_attn[:, 0:C].astype(bf16)                       # (C, C)
    w_kv = w_attn[:, C:3 * C].astype(bf16)                  # (C, 2C)
    b_q = b_attn[:, 0:C]                                    # (1, C)
    b_kv = b_attn[:, C:3 * C]                               # (1, 2C)
    # Per-head view of the attention output projection so each head's PV
    # result is projected directly (no in-kernel concatenate).
    w_proj = params["w_proj"].reshape(nh, hd, C).astype(bf16)
    w_fc = params["w_fc"].astype(bf16)                      # (C, 4C)
    w_fcp = params["w_fcp"].astype(bf16)                    # (4C, C)

    weights = [
        params["ln1_g"], params["ln1_b"],
        w_q, b_q, w_kv, b_kv,
        w_proj, params["b_proj"],
        params["ln2_g"], params["ln2_b"],
        w_fc, params["b_fc"], w_fcp, params["b_fcp"],
    ]

    def wspec(arr):
        nd = arr.ndim
        # Grid-invariant weight block: its block index never changes, so the
        # pipeline does not re-DMA it between grid steps.
        return pl.BlockSpec(arr.shape, lambda b, i: (0,) * nd)

    grid_spec = pltpu.PrefetchScalarGridSpec(
        num_scalar_prefetch=0,
        grid=(B, n_qt),                                     # both axes parallel
        in_specs=[pl.BlockSpec((1, TQ, C), lambda b, i: (b, i, 0)),  # q-row slab
                  pl.BlockSpec((1, T, C), lambda b, i: (b, 0, 0))]   # full seq (K/V)
                 + [wspec(w) for w in weights],
        out_specs=pl.BlockSpec((1, TQ, C), lambda b, i: (b, i, 0)),
    )

    return pl.pallas_call(
        block_kernel,
        out_shape=jax.ShapeDtypeStruct((B, T, C), jnp.float32),
        grid_spec=grid_spec,
        compiler_params=pltpu.CompilerParams(
            dimension_semantics=("parallel", "parallel"),
            # Above the 16/32 MiB default scoped limits (v5e/v6e), below v7x's
            # 64 MiB physical VMEM.
            vmem_limit_bytes=48 * 1024 * 1024),
    )(x, x, *weights)


def init_params(key, C):
    """Deterministic synthetic parameters (shapes follow the PyTorch module)."""
    ks = jax.random.split(key, 8)
    s = 0.02
    return {
        # LayerNorm 1
        "ln1_g": jnp.ones((1, C), jnp.float32),
        "ln1_b": jnp.zeros((1, C), jnp.float32),
        # c_attn: Linear(C, 3C)  (stored as (in, out))
        "w_attn": s * jax.random.normal(ks[0], (C, 3 * C), jnp.float32),
        "b_attn": s * jax.random.normal(ks[1], (1, 3 * C), jnp.float32),
        # attn c_proj: Linear(C, C)
        "w_proj": s * jax.random.normal(ks[2], (C, C), jnp.float32),
        "b_proj": s * jax.random.normal(ks[3], (1, C), jnp.float32),
        # LayerNorm 2
        "ln2_g": jnp.ones((1, C), jnp.float32),
        "ln2_b": jnp.zeros((1, C), jnp.float32),
        # mlp c_fc: Linear(C, 4C)
        "w_fc": s * jax.random.normal(ks[4], (C, 4 * C), jnp.float32),
        "b_fc": s * jax.random.normal(ks[5], (1, 4 * C), jnp.float32),
        # mlp c_proj: Linear(4C, C)
        "w_fcp": s * jax.random.normal(ks[6], (4 * C, C), jnp.float32),
        "b_fcp": s * jax.random.normal(ks[7], (1, C), jnp.float32),
    }


def reference_block(x, p):
    """Pure-JAX f32 reference for correctness checking."""
    B, T, C = x.shape
    nh, hd = N_HEAD, C // N_HEAD

    def ln(v, g, b):
        mu = v.mean(-1, keepdims=True)
        var = ((v - mu) ** 2).mean(-1, keepdims=True)
        return (v - mu) / jnp.sqrt(var + 1e-5) * g[0] + b[0]

    h = ln(x, p["ln1_g"], p["ln1_b"])
    qkv = h @ p["w_attn"] + p["b_attn"][0]
    q, k, v = jnp.split(qkv, 3, axis=-1)
    q = q.reshape(B, T, nh, hd).transpose(0, 2, 1, 3)
    k = k.reshape(B, T, nh, hd).transpose(0, 2, 1, 3)
    v = v.reshape(B, T, nh, hd).transpose(0, 2, 1, 3)
    att = jnp.einsum("bhtd,bhsd->bhts", q, k) / math.sqrt(hd)
    mask = jnp.tril(jnp.ones((T, T), bool))
    att = jnp.where(mask, att, -jnp.inf)
    att = jax.nn.softmax(att, axis=-1)
    y = jnp.einsum("bhts,bhsd->bhtd", att, v)
    y = y.transpose(0, 2, 1, 3).reshape(B, T, C)
    x = x + y @ p["w_proj"] + p["b_proj"][0]

    h = ln(x, p["ln2_g"], p["ln2_b"])
    h = h @ p["w_fc"] + p["b_fc"][0]
    h = 0.5 * h * (1.0 + jnp.tanh(math.sqrt(2.0 / math.pi)
                                  * (h + 0.044715 * h ** 3)))
    h = h @ p["w_fcp"] + p["b_fcp"][0]
    return x + h


if __name__ == "__main__":
    B, T, C = 2, 8, 32  # batch=2, seq=8 (block_size), n_embd=32, n_head=4
    key = jax.random.PRNGKey(0)
    kx, kp = jax.random.split(key)
    x = jax.random.normal(kx, (B, T, C), jnp.float32)
    params = init_params(kp, C)

    out = jax.block_until_ready(gpt_block(x, params))
    ref = reference_block(x, params)

    assert out.shape == (B, T, C)
    # bf16 matmul operands (f32 accumulation) loosen the tolerance vs the f32
    # reference; observed error is O(1e-3) at these shapes.
    err = float(jnp.max(jnp.abs(out - ref)))
    assert err < 2e-2, err
    print("KERNEL_OK")
</pallas_src>

<mosaic_0001>
module attributes {stable_mosaic.version = 11 : i64} {
  func.func @block_kernel(%arg0: i32, %arg1: i32, %arg2: memref<1x8x32xf32, #tpu.memory_space<vmem>>, %arg3: memref<1x8x32xf32, #tpu.memory_space<vmem>>, %arg4: memref<1x32xf32, #tpu.memory_space<vmem>>, %arg5: memref<1x32xf32, #tpu.memory_space<vmem>>, %arg6: memref<32x32xbf16, #tpu.memory_space<vmem>>, %arg7: memref<1x32xf32, #tpu.memory_space<vmem>>, %arg8: memref<32x64xbf16, #tpu.memory_space<vmem>>, %arg9: memref<1x64xf32, #tpu.memory_space<vmem>>, %arg10: memref<4x8x32xbf16, #tpu.memory_space<vmem>>, %arg11: memref<1x32xf32, #tpu.memory_space<vmem>>, %arg12: memref<1x32xf32, #tpu.memory_space<vmem>>, %arg13: memref<1x32xf32, #tpu.memory_space<vmem>>, %arg14: memref<32x128xbf16, #tpu.memory_space<vmem>>, %arg15: memref<1x128xf32, #tpu.memory_space<vmem>>, %arg16: memref<128x32xbf16, #tpu.memory_space<vmem>>, %arg17: memref<1x32xf32, #tpu.memory_space<vmem>>, %arg18: memref<1x8x32xf32, #tpu.memory_space<vmem>>) attributes {dimension_semantics = [#tpu.dimension_semantics<parallel>, #tpu.dimension_semantics<parallel>], iteration_bounds = array<i64: 2, 1>, scalar_prefetch = 0 : i64, scratch_operands = 0 : i64, tpu.core_type = #tpu.core_type<tc>, window_params = [{transform_indices = @transform_0, window_bounds = array<i64: 1, 8, 32>}, {transform_indices = @transform_1, window_bounds = array<i64: 1, 8, 32>}, {pipeline_mode = #tpu.pipeline_mode<synchronous>, transform_indices = @transform_2, window_bounds = array<i64: 1, 32>}, {pipeline_mode = #tpu.pipeline_mode<synchronous>, transform_indices = @transform_3, window_bounds = array<i64: 1, 32>}, {pipeline_mode = #tpu.pipeline_mode<synchronous>, transform_indices = @transform_4, window_bounds = array<i64: 32, 32>}, {pipeline_mode = #tpu.pipeline_mode<synchronous>, transform_indices = @transform_5, window_bounds = array<i64: 1, 32>}, {pipeline_mode = #tpu.pipeline_mode<synchronous>, transform_indices = @transform_6, window_bounds = array<i64: 32, 64>}, {pipeline_mode = #tpu.pipeline_mode<synchronous>, transform_indices = @transform_7, window_bounds = array<i64: 1, 64>}, {pipeline_mode = #tpu.pipeline_mode<synchronous>, transform_indices = @transform_8, window_bounds = array<i64: 4, 8, 32>}, {pipeline_mode = #tpu.pipeline_mode<synchronous>, transform_indices = @transform_9, window_bounds = array<i64: 1, 32>}, {pipeline_mode = #tpu.pipeline_mode<synchronous>, transform_indices = @transform_10, window_bounds = array<i64: 1, 32>}, {pipeline_mode = #tpu.pipeline_mode<synchronous>, transform_indices = @transform_11, window_bounds = array<i64: 1, 32>}, {pipeline_mode = #tpu.pipeline_mode<synchronous>, transform_indices = @transform_12, window_bounds = array<i64: 32, 128>}, {pipeline_mode = #tpu.pipeline_mode<synchronous>, transform_indices = @transform_13, window_bounds = array<i64: 1, 128>}, {pipeline_mode = #tpu.pipeline_mode<synchronous>, transform_indices = @transform_14, window_bounds = array<i64: 128, 32>}, {pipeline_mode = #tpu.pipeline_mode<synchronous>, transform_indices = @transform_15, window_bounds = array<i64: 1, 32>}, {transform_indices = @transform_16, window_bounds = array<i64: 1, 8, 32>}]} {
    %c0 = arith.constant 0 : index
    %c0_0 = arith.constant 0 : index
    %c0_1 = arith.constant 0 : index
    %0 = vector.load %arg2[%c0, %c0_0, %c0_1] : memref<1x8x32xf32, #tpu.memory_space<vmem>>, vector<1x8x32xf32>
    %1 = vector.shape_cast %0 : vector<1x8x32xf32> to vector<8x32xf32>
    %c0_2 = arith.constant 0 : index
    %c0_3 = arith.constant 0 : index
    %c0_4 = arith.constant 0 : index
    %2 = vector.load %arg3[%c0_2, %c0_3, %c0_4] : memref<1x8x32xf32, #tpu.memory_space<vmem>>, vector<1x8x32xf32>
    %3 = vector.shape_cast %2 : vector<1x8x32xf32> to vector<8x32xf32>
    %c0_5 = arith.constant 0 : index
    %c0_6 = arith.constant 0 : index
    %4 = vector.load %arg4[%c0_5, %c0_6] : memref<1x32xf32, #tpu.memory_space<vmem>>, vector<1x32xf32>
    %5 = vector.shape_cast %4 : vector<1x32xf32> to vector<32xf32>
    %c0_7 = arith.constant 0 : index
    %c0_8 = arith.constant 0 : index
    %6 = vector.load %arg5[%c0_7, %c0_8] : memref<1x32xf32, #tpu.memory_space<vmem>>, vector<1x32xf32>
    %7 = vector.shape_cast %6 : vector<1x32xf32> to vector<32xf32>
    %cst = arith.constant dense<0.000000e+00> : vector<8xf32>
    %8 = vector.multi_reduction <add>, %1, %cst [1] : vector<8x32xf32> to vector<8xf32>
    %9 = vector.shape_cast %8 : vector<8xf32> to vector<8x1xf32>
    %cst_9 = arith.constant 3.200000e+01 : f32
    %10 = vector.broadcast %cst_9 : f32 to vector<8x1xf32>
    %11 = arith.divf %9, %10 : vector<8x1xf32>
    %12 = vector.broadcast %11 : vector<8x1xf32> to vector<8x32xf32>
    %13 = arith.subf %1, %12 : vector<8x32xf32>
    %14 = arith.mulf %13, %13 : vector<8x32xf32>
    %cst_10 = arith.constant dense<0.000000e+00> : vector<8xf32>
    %15 = vector.multi_reduction <add>, %14, %cst_10 [1] : vector<8x32xf32> to vector<8xf32>
    %16 = vector.shape_cast %15 : vector<8xf32> to vector<8x1xf32>
    %cst_11 = arith.constant 3.200000e+01 : f32
    %17 = vector.broadcast %cst_11 : f32 to vector<8x1xf32>
    %18 = arith.divf %16, %17 : vector<8x1xf32>
    %19 = vector.broadcast %11 : vector<8x1xf32> to vector<8x32xf32>
    %20 = arith.subf %1, %19 : vector<8x32xf32>
    %cst_12 = arith.constant 9.99999974E-6 : f32
    %21 = vector.broadcast %cst_12 : f32 to vector<8x1xf32>
    %22 = arith.addf %18, %21 : vector<8x1xf32>
    %23 = math.rsqrt %22 : vector<8x1xf32>
    %24 = vector.broadcast %23 : vector<8x1xf32> to vector<8x32xf32>
    %25 = arith.mulf %20, %24 : vector<8x32xf32>
    %26 = vector.shape_cast %5 : vector<32xf32> to vector<1x32xf32>
    %27 = vector.broadcast %26 : vector<1x32xf32> to vector<8x32xf32>
    %28 = arith.mulf %25, %27 : vector<8x32xf32>
    %29 = vector.shape_cast %7 : vector<32xf32> to vector<1x32xf32>
    %30 = vector.broadcast %29 : vector<1x32xf32> to vector<8x32xf32>
    %31 = arith.addf %28, %30 : vector<8x32xf32>
    %c0_13 = arith.constant 0 : index
    %c0_14 = arith.constant 0 : index
    %32 = vector.load %arg4[%c0_13, %c0_14] : memref<1x32xf32, #tpu.memory_space<vmem>>, vector<1x32xf32>
    %33 = vector.shape_cast %32 : vector<1x32xf32> to vector<32xf32>
    %c0_15 = arith.constant 0 : index
    %c0_16 = arith.constant 0 : index
    %34 = vector.load %arg5[%c0_15, %c0_16] : memref<1x32xf32, #tpu.memory_space<vmem>>, vector<1x32xf32>
    %35 = vector.shape_cast %34 : vector<1x32xf32> to vector<32xf32>
    %cst_17 = arith.constant dense<0.000000e+00> : vector<8xf32>
    %36 = vector.multi_reduction <add>, %3, %cst_17 [1] : vector<8x32xf32> to vector<8xf32>
    %37 = vector.shape_cast %36 : vector<8xf32> to vector<8x1xf32>
    %cst_18 = arith.constant 3.200000e+01 : f32
    %38 = vector.broadcast %cst_18 : f32 to vector<8x1xf32>
    %39 = arith.divf %37, %38 : vector<8x1xf32>
    %40 = vector.broadcast %39 : vector<8x1xf32> to vector<8x32xf32>
    %41 = arith.subf %3, %40 : vector<8x32xf32>
    %42 = arith.mulf %41, %41 : vector<8x32xf32>
    %cst_19 = arith.constant dense<0.000000e+00> : vector<8xf32>
    %43 = vector.multi_reduction <add>, %42, %cst_19 [1] : vector<8x32xf32> to vector<8xf32>
    %44 = vector.shape_cast %43 : vector<8xf32> to vector<8x1xf32>
    %cst_20 = arith.constant 3.200000e+01 : f32
    %45 = vector.broadcast %cst_20 : f32 to vector<8x1xf32>
    %46 = arith.divf %44, %45 : vector<8x1xf32>
    %47 = vector.broadcast %39 : vector<8x1xf32> to vector<8x32xf32>
    %48 = arith.subf %3, %47 : vector<8x32xf32>
    %cst_21 = arith.constant 9.99999974E-6 : f32
    %49 = vector.broadcast %cst_21 : f32 to vector<8x1xf32>
    %50 = arith.addf %46, %49 : vector<8x1xf32>
    %51 = math.rsqrt %50 : vector<8x1xf32>
    %52 = vector.broadcast %51 : vector<8x1xf32> to vector<8x32xf32>
    %53 = arith.mulf %48, %52 : vector<8x32xf32>
    %54 = vector.shape_cast %33 : vector<32xf32> to vector<1x32xf32>
    %55 = vector.broadcast %54 : vector<1x32xf32> to vector<8x32xf32>
    %56 = arith.mulf %53, %55 : vector<8x32xf32>
    %57 = vector.shape_cast %35 : vector<32xf32> to vector<1x32xf32>
    %58 = vector.broadcast %57 : vector<1x32xf32> to vector<8x32xf32>
    %59 = arith.addf %56, %58 : vector<8x32xf32>
    %60 = arith.truncf %31 : vector<8x32xf32> to vector<8x32xbf16>
    %c0_22 = arith.constant 0 : index
    %c0_23 = arith.constant 0 : index
    %61 = vector.load %arg6[%c0_22, %c0_23] : memref<32x32xbf16, #tpu.memory_space<vmem>>, vector<32x32xbf16>
    %cst_24 = arith.constant dense<0.000000e+00> : vector<8x32xf32>
    %62 = tpu.matmul %60, %61, %cst_24 {dimension_numbers = #tpu.dot_dimension_numbers<[1], [0], [0], [1], [0, 0, 1, 1], [], []>} : vector<8x32xbf16>, vector<32x32xbf16>, vector<8x32xf32> -> vector<8x32xf32>
    %c0_25 = arith.constant 0 : index
    %c0_26 = arith.constant 0 : index
    %63 = vector.load %arg7[%c0_25, %c0_26] : memref<1x32xf32, #tpu.memory_space<vmem>>, vector<1x32xf32>
    %64 = vector.shape_cast %63 : vector<1x32xf32> to vector<32xf32>
    %65 = vector.shape_cast %64 : vector<32xf32> to vector<1x32xf32>
    %66 = vector.broadcast %65 : vector<1x32xf32> to vector<8x32xf32>
    %67 = arith.addf %62, %66 : vector<8x32xf32>
    %68 = arith.truncf %59 : vector<8x32xf32> to vector<8x32xbf16>
    %c0_27 = arith.constant 0 : index
    %c0_28 = arith.constant 0 : index
    %69 = vector.load %arg8[%c0_27, %c0_28] : memref<32x64xbf16, #tpu.memory_space<vmem>>, vector<32x64xbf16>
    %cst_29 = arith.constant dense<0.000000e+00> : vector<8x64xf32>
    %70 = tpu.matmul %68, %69, %cst_29 {dimension_numbers = #tpu.dot_dimension_numbers<[1], [0], [0], [1], [0, 0, 1, 1], [], []>} : vector<8x32xbf16>, vector<32x64xbf16>, vector<8x64xf32> -> vector<8x64xf32>
    %c0_30 = arith.constant 0 : index
    %c0_31 = arith.constant 0 : index
    %71 = vector.load %arg9[%c0_30, %c0_31] : memref<1x64xf32, #tpu.memory_space<vmem>>, vector<1x64xf32>
    %72 = vector.shape_cast %71 : vector<1x64xf32> to vector<64xf32>
    %73 = vector.shape_cast %72 : vector<64xf32> to vector<1x64xf32>
    %74 = vector.broadcast %73 : vector<1x64xf32> to vector<8x64xf32>
    %75 = arith.addf %70, %74 : vector<8x64xf32>
    %76 = vector.extract_strided_slice %75 {offsets = [0, 0], sizes = [8, 32], strides = [1, 1]} : vector<8x64xf32> to vector<8x32xf32>
    %77 = vector.extract_strided_slice %75 {offsets = [0, 32], sizes = [8, 32], strides = [1, 1]} : vector<8x64xf32> to vector<8x32xf32>
    %c8_i32 = arith.constant 8 : i32
    %78 = arith.muli %arg1, %c8_i32 : i32
    %79 = tpu.iota {dimensions = array<i32: 0>} : vector<8x8xi32>
    %80 = vector.broadcast %78 : i32 to vector<8x8xi32>
    %81 = arith.addi %80, %79 : vector<8x8xi32>
    %82 = tpu.iota {dimensions = array<i32: 1>} : vector<8x8xi32>
    %83 = arith.cmpi sle, %82, %81 : vector<8x8xi32>
    %cst_32 = arith.constant 0.000000e+00 : f32
    %84 = vector.broadcast %cst_32 : f32 to vector<8x32xf32>
    %85 = vector.extract_strided_slice %67 {offsets = [0, 0], sizes = [8, 8], strides = [1, 1]} : vector<8x32xf32> to vector<8x8xf32>
    %86 = arith.truncf %85 : vector<8x8xf32> to vector<8x8xbf16>
    %87 = vector.extract_strided_slice %76 {offsets = [0, 0], sizes = [8, 8], strides = [1, 1]} : vector<8x32xf32> to vector<8x8xf32>
    %88 = arith.truncf %87 : vector<8x8xf32> to vector<8x8xbf16>
    %89 = vector.extract_strided_slice %77 {offsets = [0, 0], sizes = [8, 8], strides = [1, 1]} : vector<8x32xf32> to vector<8x8xf32>
    %90 = arith.truncf %89 : vector<8x8xf32> to vector<8x8xbf16>
    %cst_33 = arith.constant dense<0.000000e+00> : vector<8x8xf32>
    %91 = tpu.matmul %86, %88, %cst_33 {dimension_numbers = #tpu.dot_dimension_numbers<[1], [1], [0], [0], [0, 0, 1, 0], [], []>} : vector<8x8xbf16>, vector<8x8xbf16>, vector<8x8xf32> -> vector<8x8xf32>
    %cst_34 = arith.constant 0.353553385 : f32
    %92 = vector.broadcast %cst_34 : f32 to vector<8x8xf32>
    %93 = arith.mulf %91, %92 : vector<8x8xf32>
    %cst_35 = arith.constant 0xFF800000 : f32
    %94 = vector.broadcast %cst_35 : f32 to vector<8x8xf32>
    %95 = arith.select %83, %93, %94 : vector<8x8xi1>, vector<8x8xf32>
    %cst_36 = arith.constant dense<0xFF800000> : vector<8xf32>
    %96 = vector.multi_reduction <maximumf>, %95, %cst_36 [1] : vector<8x8xf32> to vector<8xf32>
    %97 = vector.shape_cast %96 : vector<8xf32> to vector<8x1xf32>
    %98 = vector.broadcast %97 : vector<8x1xf32> to vector<8x8xf32>
    %99 = arith.subf %95, %98 : vector<8x8xf32>
    %100 = math.exp %99 : vector<8x8xf32>
    %cst_37 = arith.constant dense<0.000000e+00> : vector<8xf32>
    %101 = vector.multi_reduction <add>, %100, %cst_37 [1] : vector<8x8xf32> to vector<8xf32>
    %102 = vector.shape_cast %101 : vector<8xf32> to vector<8x1xf32>
    %103 = tpu.reciprocal %102 {approx = true} : vector<8x1xf32> -> vector<8x1xf32>
    %104 = vector.broadcast %103 : vector<8x1xf32> to vector<8x8xf32>
    %105 = arith.mulf %100, %104 : vector<8x8xf32>
    %106 = arith.truncf %105 : vector<8x8xf32> to vector<8x8xbf16>
    %cst_38 = arith.constant dense<0.000000e+00> : vector<8x8xf32>
    %107 = tpu.matmul %106, %90, %cst_38 {dimension_numbers = #tpu.dot_dimension_numbers<[1], [0], [0], [1], [0, 0, 1, 1], [], []>} : vector<8x8xbf16>, vector<8x8xbf16>, vector<8x8xf32> -> vector<8x8xf32>
    %108 = arith.truncf %107 : vector<8x8xf32> to vector<8x8xbf16>
    %c0_39 = arith.constant 0 : index
    %c0_40 = arith.constant 0 : index
    %c0_41 = arith.constant 0 : index
    %109 = vector.load %arg10[%c0_39, %c0_40, %c0_41] : memref<4x8x32xbf16, #tpu.memory_space<vmem>>, vector<1x8x32xbf16>
    %110 = vector.shape_cast %109 : vector<1x8x32xbf16> to vector<8x32xbf16>
    %cst_42 = arith.constant dense<0.000000e+00> : vector<8x32xf32>
    %111 = tpu.matmul %108, %110, %cst_42 {dimension_numbers = #tpu.dot_dimension_numbers<[1], [0], [0], [1], [0, 0, 1, 1], [], []>} : vector<8x8xbf16>, vector<8x32xbf16>, vector<8x32xf32> -> vector<8x32xf32>
    %112 = arith.addf %84, %111 : vector<8x32xf32>
    %113 = vector.extract_strided_slice %67 {offsets = [0, 8], sizes = [8, 8], strides = [1, 1]} : vector<8x32xf32> to vector<8x8xf32>
    %114 = arith.truncf %113 : vector<8x8xf32> to vector<8x8xbf16>
    %115 = vector.extract_strided_slice %76 {offsets = [0, 8], sizes = [8, 8], strides = [1, 1]} : vector<8x32xf32> to vector<8x8xf32>
    %116 = arith.truncf %115 : vector<8x8xf32> to vector<8x8xbf16>
    %117 = vector.extract_strided_slice %77 {offsets = [0, 8], sizes = [8, 8], strides = [1, 1]} : vector<8x32xf32> to vector<8x8xf32>
    %118 = arith.truncf %117 : vector<8x8xf32> to vector<8x8xbf16>
    %cst_43 = arith.constant dense<0.000000e+00> : vector<8x8xf32>
    %119 = tpu.matmul %114, %116, %cst_43 {dimension_numbers = #tpu.dot_dimension_numbers<[1], [1], [0], [0], [0, 0, 1, 0], [], []>} : vector<8x8xbf16>, vector<8x8xbf16>, vector<8x8xf32> -> vector<8x8xf32>
    %cst_44 = arith.constant 0.353553385 : f32
    %120 = vector.broadcast %cst_44 : f32 to vector<8x8xf32>
    %121 = arith.mulf %119, %120 : vector<8x8xf32>
    %cst_45 = arith.constant 0xFF800000 : f32
    %122 = vector.broadcast %cst_45 : f32 to vector<8x8xf32>
    %123 = arith.select %83, %121, %122 : vector<8x8xi1>, vector<8x8xf32>
    %cst_46 = arith.constant dense<0xFF800000> : vector<8xf32>
    %124 = vector.multi_reduction <maximumf>, %123, %cst_46 [1] : vector<8x8xf32> to vector<8xf32>
    %125 = vector.shape_cast %124 : vector<8xf32> to vector<8x1xf32>
    %126 = vector.broadcast %125 : vector<8x1xf32> to vector<8x8xf32>
    %127 = arith.subf %123, %126 : vector<8x8xf32>
    %128 = math.exp %127 : vector<8x8xf32>
    %cst_47 = arith.constant dense<0.000000e+00> : vector<8xf32>
    %129 = vector.multi_reduction <add>, %128, %cst_47 [1] : vector<8x8xf32> to vector<8xf32>
    %130 = vector.shape_cast %129 : vector<8xf32> to vector<8x1xf32>
    %131 = tpu.reciprocal %130 {approx = true} : vector<8x1xf32> -> vector<8x1xf32>
    %132 = vector.broadcast %131 : vector<8x1xf32> to vector<8x8xf32>
    %133 = arith.mulf %128, %132 : vector<8x8xf32>
    %134 = arith.truncf %133 : vector<8x8xf32> to vector<8x8xbf16>
    %cst_48 = arith.constant dense<0.000000e+00> : vector<8x8xf32>
    %135 = tpu.matmul %134, %118, %cst_48 {dimension_numbers = #tpu.dot_dimension_numbers<[1], [0], [0], [1], [0, 0, 1, 1], [], []>} : vector<8x8xbf16>, vector<8x8xbf16>, vector<8x8xf32> -> vector<8x8xf32>
    %136 = arith.truncf %135 : vector<8x8xf32> to vector<8x8xbf16>
    %c1 = arith.constant 1 : index
    %c0_49 = arith.constant 0 : index
    %c0_50 = arith.constant 0 : index
    %137 = vector.load %arg10[%c1, %c0_49, %c0_50] : memref<4x8x32xbf16, #tpu.memory_space<vmem>>, vector<1x8x32xbf16>
    %138 = vector.shape_cast %137 : vector<1x8x32xbf16> to vector<8x32xbf16>
    %cst_51 = arith.constant dense<0.000000e+00> : vector<8x32xf32>
    %139 = tpu.matmul %136, %138, %cst_51 {dimension_numbers = #tpu.dot_dimension_numbers<[1], [0], [0], [1], [0, 0, 1, 1], [], []>} : vector<8x8xbf16>, vector<8x32xbf16>, vector<8x32xf32> -> vector<8x32xf32>
    %140 = arith.addf %112, %139 : vector<8x32xf32>
    %141 = vector.extract_strided_slice %67 {offsets = [0, 16], sizes = [8, 8], strides = [1, 1]} : vector<8x32xf32> to vector<8x8xf32>
    %142 = arith.truncf %141 : vector<8x8xf32> to vector<8x8xbf16>
    %143 = vector.extract_strided_slice %76 {offsets = [0, 16], sizes = [8, 8], strides = [1, 1]} : vector<8x32xf32> to vector<8x8xf32>
    %144 = arith.truncf %143 : vector<8x8xf32> to vector<8x8xbf16>
    %145 = vector.extract_strided_slice %77 {offsets = [0, 16], sizes = [8, 8], strides = [1, 1]} : vector<8x32xf32> to vector<8x8xf32>
    %146 = arith.truncf %145 : vector<8x8xf32> to vector<8x8xbf16>
    %cst_52 = arith.constant dense<0.000000e+00> : vector<8x8xf32>
    %147 = tpu.matmul %142, %144, %cst_52 {dimension_numbers = #tpu.dot_dimension_numbers<[1], [1], [0], [0], [0, 0, 1, 0], [], []>} : vector<8x8xbf16>, vector<8x8xbf16>, vector<8x8xf32> -> vector<8x8xf32>
    %cst_53 = arith.constant 0.353553385 : f32
    %148 = vector.broadcast %cst_53 : f32 to vector<8x8xf32>
    %149 = arith.mulf %147, %148 : vector<8x8xf32>
    %cst_54 = arith.constant 0xFF800000 : f32
    %150 = vector.broadcast %cst_54 : f32 to vector<8x8xf32>
    %151 = arith.select %83, %149, %150 : vector<8x8xi1>, vector<8x8xf32>
    %cst_55 = arith.constant dense<0xFF800000> : vector<8xf32>
    %152 = vector.multi_reduction <maximumf>, %151, %cst_55 [1] : vector<8x8xf32> to vector<8xf32>
    %153 = vector.shape_cast %152 : vector<8xf32> to vector<8x1xf32>
    %154 = vector.broadcast %153 : vector<8x1xf32> to vector<8x8xf32>
    %155 = arith.subf %151, %154 : vector<8x8xf32>
    %156 = math.exp %155 : vector<8x8xf32>
    %cst_56 = arith.constant dense<0.000000e+00> : vector<8xf32>
    %157 = vector.multi_reduction <add>, %156, %cst_56 [1] : vector<8x8xf32> to vector<8xf32>
    %158 = vector.shape_cast %157 : vector<8xf32> to vector<8x1xf32>
    %159 = tpu.reciprocal %158 {approx = true} : vector<8x1xf32> -> vector<8x1xf32>
    %160 = vector.broadcast %159 : vector<8x1xf32> to vector<8x8xf32>
    %161 = arith.mulf %156, %160 : vector<8x8xf32>
    %162 = arith.truncf %161 : vector<8x8xf32> to vector<8x8xbf16>
    %cst_57 = arith.constant dense<0.000000e+00> : vector<8x8xf32>
    %163 = tpu.matmul %162, %146, %cst_57 {dimension_numbers = #tpu.dot_dimension_numbers<[1], [0], [0], [1], [0, 0, 1, 1], [], []>} : vector<8x8xbf16>, vector<8x8xbf16>, vector<8x8xf32> -> vector<8x8xf32>
    %164 = arith.truncf %163 : vector<8x8xf32> to vector<8x8xbf16>
    %c2 = arith.constant 2 : index
    %c0_58 = arith.constant 0 : index
    %c0_59 = arith.constant 0 : index
    %165 = vector.load %arg10[%c2, %c0_58, %c0_59] : memref<4x8x32xbf16, #tpu.memory_space<vmem>>, vector<1x8x32xbf16>
    %166 = vector.shape_cast %165 : vector<1x8x32xbf16> to vector<8x32xbf16>
    %cst_60 = arith.constant dense<0.000000e+00> : vector<8x32xf32>
    %167 = tpu.matmul %164, %166, %cst_60 {dimension_numbers = #tpu.dot_dimension_numbers<[1], [0], [0], [1], [0, 0, 1, 1], [], []>} : vector<8x8xbf16>, vector<8x32xbf16>, vector<8x32xf32> -> vector<8x32xf32>
    %168 = arith.addf %140, %167 : vector<8x32xf32>
    %169 = vector.extract_strided_slice %67 {offsets = [0, 24], sizes = [8, 8], strides = [1, 1]} : vector<8x32xf32> to vector<8x8xf32>
    %170 = arith.truncf %169 : vector<8x8xf32> to vector<8x8xbf16>
    %171 = vector.extract_strided_slice %76 {offsets = [0, 24], sizes = [8, 8], strides = [1, 1]} : vector<8x32xf32> to vector<8x8xf32>
    %172 = arith.truncf %171 : vector<8x8xf32> to vector<8x8xbf16>
    %173 = vector.extract_strided_slice %77 {offsets = [0, 24], sizes = [8, 8], strides = [1, 1]} : vector<8x32xf32> to vector<8x8xf32>
    %174 = arith.truncf %173 : vector<8x8xf32> to vector<8x8xbf16>
    %cst_61 = arith.constant dense<0.000000e+00> : vector<8x8xf32>
    %175 = tpu.matmul %170, %172, %cst_61 {dimension_numbers = #tpu.dot_dimension_numbers<[1], [1], [0], [0], [0, 0, 1, 0], [], []>} : vector<8x8xbf16>, vector<8x8xbf16>, vector<8x8xf32> -> vector<8x8xf32>
    %cst_62 = arith.constant 0.353553385 : f32
    %176 = vector.broadcast %cst_62 : f32 to vector<8x8xf32>
    %177 = arith.mulf %175, %176 : vector<8x8xf32>
    %cst_63 = arith.constant 0xFF800000 : f32
    %178 = vector.broadcast %cst_63 : f32 to vector<8x8xf32>
    %179 = arith.select %83, %177, %178 : vector<8x8xi1>, vector<8x8xf32>
    %cst_64 = arith.constant dense<0xFF800000> : vector<8xf32>
    %180 = vector.multi_reduction <maximumf>, %179, %cst_64 [1] : vector<8x8xf32> to vector<8xf32>
    %181 = vector.shape_cast %180 : vector<8xf32> to vector<8x1xf32>
    %182 = vector.broadcast %181 : vector<8x1xf32> to vector<8x8xf32>
    %183 = arith.subf %179, %182 : vector<8x8xf32>
    %184 = math.exp %183 : vector<8x8xf32>
    %cst_65 = arith.constant dense<0.000000e+00> : vector<8xf32>
    %185 = vector.multi_reduction <add>, %184, %cst_65 [1] : vector<8x8xf32> to vector<8xf32>
    %186 = vector.shape_cast %185 : vector<8xf32> to vector<8x1xf32>
    %187 = tpu.reciprocal %186 {approx = true} : vector<8x1xf32> -> vector<8x1xf32>
    %188 = vector.broadcast %187 : vector<8x1xf32> to vector<8x8xf32>
    %189 = arith.mulf %184, %188 : vector<8x8xf32>
    %190 = arith.truncf %189 : vector<8x8xf32> to vector<8x8xbf16>
    %cst_66 = arith.constant dense<0.000000e+00> : vector<8x8xf32>
    %191 = tpu.matmul %190, %174, %cst_66 {dimension_numbers = #tpu.dot_dimension_numbers<[1], [0], [0], [1], [0, 0, 1, 1], [], []>} : vector<8x8xbf16>, vector<8x8xbf16>, vector<8x8xf32> -> vector<8x8xf32>
    %192 = arith.truncf %191 : vector<8x8xf32> to vector<8x8xbf16>
    %c3 = arith.constant 3 : index
    %c0_67 = arith.constant 0 : index
    %c0_68 = arith.constant 0 : index
    %193 = vector.load %arg10[%c3, %c0_67, %c0_68] : memref<4x8x32xbf16, #tpu.memory_space<vmem>>, vector<1x8x32xbf16>
    %194 = vector.shape_cast %193 : vector<1x8x32xbf16> to vector<8x32xbf16>
    %cst_69 = arith.constant dense<0.000000e+00> : vector<8x32xf32>
    %195 = tpu.matmul %192, %194, %cst_69 {dimension_numbers = #tpu.dot_dimension_numbers<[1], [0], [0], [1], [0, 0, 1, 1], [], []>} : vector<8x8xbf16>, vector<8x32xbf16>, vector<8x32xf32> -> vector<8x32xf32>
    %196 = arith.addf %168, %195 : vector<8x32xf32>
    %197 = arith.addf %1, %196 : vector<8x32xf32>
    %c0_70 = arith.constant 0 : index
    %c0_71 = arith.constant 0 : index
    %198 = vector.load %arg11[%c0_70, %c0_71] : memref<1x32xf32, #tpu.memory_space<vmem>>, vector<1x32xf32>
    %199 = vector.shape_cast %198 : vector<1x32xf32> to vector<32xf32>
    %200 = vector.shape_cast %199 : vector<32xf32> to vector<1x32xf32>
    %201 = vector.broadcast %200 : vector<1x32xf32> to vector<8x32xf32>
    %202 = arith.addf %197, %201 : vector<8x32xf32>
    %c0_72 = arith.constant 0 : index
    %c0_73 = arith.constant 0 : index
    %203 = vector.load %arg12[%c0_72, %c0_73] : memref<1x32xf32, #tpu.memory_space<vmem>>, vector<1x32xf32>
    %204 = vector.shape_cast %203 : vector<1x32xf32> to vector<32xf32>
    %c0_74 = arith.constant 0 : index
    %c0_75 = arith.constant 0 : index
    %205 = vector.load %arg13[%c0_74, %c0_75] : memref<1x32xf32, #tpu.memory_space<vmem>>, vector<1x32xf32>
    %206 = vector.shape_cast %205 : vector<1x32xf32> to vector<32xf32>
    %cst_76 = arith.constant dense<0.000000e+00> : vector<8xf32>
    %207 = vector.multi_reduction <add>, %202, %cst_76 [1] : vector<8x32xf32> to vector<8xf32>
    %208 = vector.shape_cast %207 : vector<8xf32> to vector<8x1xf32>
    %cst_77 = arith.constant 3.200000e+01 : f32
    %209 = vector.broadcast %cst_77 : f32 to vector<8x1xf32>
    %210 = arith.divf %208, %209 : vector<8x1xf32>
    %211 = vector.broadcast %210 : vector<8x1xf32> to vector<8x32xf32>
    %212 = arith.subf %202, %211 : vector<8x32xf32>
    %213 = arith.mulf %212, %212 : vector<8x32xf32>
    %cst_78 = arith.constant dense<0.000000e+00> : vector<8xf32>
    %214 = vector.multi_reduction <add>, %213, %cst_78 [1] : vector<8x32xf32> to vector<8xf32>
    %215 = vector.shape_cast %214 : vector<8xf32> to vector<8x1xf32>
    %cst_79 = arith.constant 3.200000e+01 : f32
    %216 = vector.broadcast %cst_79 : f32 to vector<8x1xf32>
    %217 = arith.divf %215, %216 : vector<8x1xf32>
    %218 = vector.broadcast %210 : vector<8x1xf32> to vector<8x32xf32>
    %219 = arith.subf %202, %218 : vector<8x32xf32>
    %cst_80 = arith.constant 9.99999974E-6 : f32
    %220 = vector.broadcast %cst_80 : f32 to vector<8x1xf32>
    %221 = arith.addf %217, %220 : vector<8x1xf32>
    %222 = math.rsqrt %221 : vector<8x1xf32>
    %223 = vector.broadcast %222 : vector<8x1xf32> to vector<8x32xf32>
    %224 = arith.mulf %219, %223 : vector<8x32xf32>
    %225 = vector.shape_cast %204 : vector<32xf32> to vector<1x32xf32>
    %226 = vector.broadcast %225 : vector<1x32xf32> to vector<8x32xf32>
    %227 = arith.mulf %224, %226 : vector<8x32xf32>
    %228 = vector.shape_cast %206 : vector<32xf32> to vector<1x32xf32>
    %229 = vector.broadcast %228 : vector<1x32xf32> to vector<8x32xf32>
    %230 = arith.addf %227, %229 : vector<8x32xf32>
    %231 = arith.truncf %230 : vector<8x32xf32> to vector<8x32xbf16>
    %c0_81 = arith.constant 0 : index
    %c0_82 = arith.constant 0 : index
    %232 = vector.load %arg14[%c0_81, %c0_82] : memref<32x128xbf16, #tpu.memory_space<vmem>>, vector<32x128xbf16>
    %cst_83 = arith.constant dense<0.000000e+00> : vector<8x128xf32>
    %233 = tpu.matmul %231, %232, %cst_83 {dimension_numbers = #tpu.dot_dimension_numbers<[1], [0], [0], [1], [0, 0, 1, 1], [], []>} : vector<8x32xbf16>, vector<32x128xbf16>, vector<8x128xf32> -> vector<8x128xf32>
    %c0_84 = arith.constant 0 : index
    %c0_85 = arith.constant 0 : index
    %234 = vector.load %arg15[%c0_84, %c0_85] : memref<1x128xf32, #tpu.memory_space<vmem>>, vector<1x128xf32>
    %235 = vector.shape_cast %234 : vector<1x128xf32> to vector<128xf32>
    %236 = vector.shape_cast %235 : vector<128xf32> to vector<1x128xf32>
    %237 = vector.broadcast %236 : vector<1x128xf32> to vector<8x128xf32>
    %238 = arith.addf %233, %237 : vector<8x128xf32>
    %cst_86 = arith.constant 5.000000e-01 : f32
    %239 = vector.broadcast %cst_86 : f32 to vector<8x128xf32>
    %240 = arith.mulf %239, %238 : vector<8x128xf32>
    %241 = arith.mulf %238, %238 : vector<8x128xf32>
    %242 = arith.mulf %238, %241 : vector<8x128xf32>
    %cst_87 = arith.constant 4.471500e-02 : f32
    %243 = vector.broadcast %cst_87 : f32 to vector<8x128xf32>
    %244 = arith.mulf %243, %242 : vector<8x128xf32>
    %245 = arith.addf %238, %244 : vector<8x128xf32>
    %cst_88 = arith.constant 0.797884583 : f32
    %246 = vector.broadcast %cst_88 : f32 to vector<8x128xf32>
    %247 = arith.mulf %246, %245 : vector<8x128xf32>
    %248 = math.tanh %247 : vector<8x128xf32>
    %cst_89 = arith.constant 1.000000e+00 : f32
    %249 = vector.broadcast %cst_89 : f32 to vector<8x128xf32>
    %250 = arith.addf %249, %248 : vector<8x128xf32>
    %251 = arith.mulf %240, %250 : vector<8x128xf32>
    %252 = arith.truncf %251 : vector<8x128xf32> to vector<8x128xbf16>
    %c0_90 = arith.constant 0 : index
    %c0_91 = arith.constant 0 : index
    %253 = vector.load %arg16[%c0_90, %c0_91] : memref<128x32xbf16, #tpu.memory_space<vmem>>, vector<128x32xbf16>
    %cst_92 = arith.constant dense<0.000000e+00> : vector<8x32xf32>
    %254 = tpu.matmul %252, %253, %cst_92 {dimension_numbers = #tpu.dot_dimension_numbers<[1], [0], [0], [1], [0, 0, 1, 1], [], []>} : vector<8x128xbf16>, vector<128x32xbf16>, vector<8x32xf32> -> vector<8x32xf32>
    %c0_93 = arith.constant 0 : index
    %c0_94 = arith.constant 0 : index
    %255 = vector.load %arg17[%c0_93, %c0_94] : memref<1x32xf32, #tpu.memory_space<vmem>>, vector<1x32xf32>
    %256 = vector.shape_cast %255 : vector<1x32xf32> to vector<32xf32>
    %257 = vector.shape_cast %256 : vector<32xf32> to vector<1x32xf32>
    %258 = vector.broadcast %257 : vector<1x32xf32> to vector<8x32xf32>
    %259 = arith.addf %254, %258 : vector<8x32xf32>
    %260 = arith.addf %202, %259 : vector<8x32xf32>
    %c0_95 = arith.constant 0 : index
    %c0_96 = arith.constant 0 : index
    %c0_97 = arith.constant 0 : index
    %261 = vector.load %arg18[%c0_95, %c0_96, %c0_97] : memref<1x8x32xf32, #tpu.memory_space<vmem>>, vector<1x8x32xf32>
    %262 = vector.shape_cast %261 : vector<1x8x32xf32> to vector<8x32xf32>
    %263 = vector.shape_cast %260 : vector<8x32xf32> to vector<1x8x32xf32>
    tpu.vector_store %arg18[%c0_95, %c0_96, %c0_97], %263 {strides = array<i32>} : memref<1x8x32xf32, #tpu.memory_space<vmem>>, vector<1x8x32xf32>,
    return
  }
  func.func @transform_0(%arg0: i32, %arg1: i32) -> (i32, i32, i32) {
    %c0_i32 = arith.constant 0 : i32
    %c0_i32_0 = arith.constant 0 : i32
    return %arg0, %arg1, %c0_i32 : i32, i32, i32
  }
  func.func @transform_1(%arg0: i32, %arg1: i32) -> (i32, i32, i32) {
    %c0_i32 = arith.constant 0 : i32
    %c0_i32_0 = arith.constant 0 : i32
    %c0_i32_1 = arith.constant 0 : i32
    return %arg0, %c0_i32, %c0_i32_0 : i32, i32, i32
  }
  func.func @transform_2(%arg0: i32, %arg1: i32) -> (i32, i32) {
    %c0_i32 = arith.constant 0 : i32
    %c0_i32_0 = arith.constant 0 : i32
    %c0_i32_1 = arith.constant 0 : i32
    return %c0_i32, %c0_i32_0 : i32, i32
  }
  func.func @transform_3(%arg0: i32, %arg1: i32) -> (i32, i32) {
    %c0_i32 = arith.constant 0 : i32
    %c0_i32_0 = arith.constant 0 : i32
    %c0_i32_1 = arith.constant 0 : i32
    return %c0_i32, %c0_i32_0 : i32, i32
  }
  func.func @transform_4(%arg0: i32, %arg1: i32) -> (i32, i32) {
    %c0_i32 = arith.constant 0 : i32
    %c0_i32_0 = arith.constant 0 : i32
    %c0_i32_1 = arith.constant 0 : i32
    return %c0_i32, %c0_i32_0 : i32, i32
  }
  func.func @transform_5(%arg0: i32, %arg1: i32) -> (i32, i32) {
    %c0_i32 = arith.constant 0 : i32
    %c0_i32_0 = arith.constant 0 : i32
    %c0_i32_1 = arith.constant 0 : i32
    return %c0_i32, %c0_i32_0 : i32, i32
  }
  func.func @transform_6(%arg0: i32, %arg1: i32) -> (i32, i32) {
    %c0_i32 = arith.constant 0 : i32
    %c0_i32_0 = arith.constant 0 : i32
    %c0_i32_1 = arith.constant 0 : i32
    return %c0_i32, %c0_i32_0 : i32, i32
  }
  func.func @transform_7(%arg0: i32, %arg1: i32) -> (i32, i32) {
    %c0_i32 = arith.constant 0 : i32
    %c0_i32_0 = arith.constant 0 : i32
    %c0_i32_1 = arith.constant 0 : i32
    return %c0_i32, %c0_i32_0 : i32, i32
  }
  func.func @transform_8(%arg0: i32, %arg1: i32) -> (i32, i32, i32) {
    %c0_i32 = arith.constant 0 : i32
    %c0_i32_0 = arith.constant 0 : i32
    %c0_i32_1 = arith.constant 0 : i32
    %c0_i32_2 = arith.constant 0 : i32
    return %c0_i32, %c0_i32_0, %c0_i32_1 : i32, i32, i32
  }
  func.func @transform_9(%arg0: i32, %arg1: i32) -> (i32, i32) {
    %c0_i32 = arith.constant 0 : i32
    %c0_i32_0 = arith.constant 0 : i32
    %c0_i32_1 = arith.constant 0 : i32
    return %c0_i32, %c0_i32_0 : i32, i32
  }
  func.func @transform_10(%arg0: i32, %arg1: i32) -> (i32, i32) {
    %c0_i32 = arith.constant 0 : i32
    %c0_i32_0 = arith.constant 0 : i32
    %c0_i32_1 = arith.constant 0 : i32
    return %c0_i32, %c0_i32_0 : i32, i32
  }
  func.func @transform_11(%arg0: i32, %arg1: i32) -> (i32, i32) {
    %c0_i32 = arith.constant 0 : i32
    %c0_i32_0 = arith.constant 0 : i32
    %c0_i32_1 = arith.constant 0 : i32
    return %c0_i32, %c0_i32_0 : i32, i32
  }
  func.func @transform_12(%arg0: i32, %arg1: i32) -> (i32, i32) {
    %c0_i32 = arith.constant 0 : i32
    %c0_i32_0 = arith.constant 0 : i32
    %c0_i32_1 = arith.constant 0 : i32
    return %c0_i32, %c0_i32_0 : i32, i32
  }
  func.func @transform_13(%arg0: i32, %arg1: i32) -> (i32, i32) {
    %c0_i32 = arith.constant 0 : i32
    %c0_i32_0 = arith.constant 0 : i32
    %c0_i32_1 = arith.constant 0 : i32
    return %c0_i32, %c0_i32_0 : i32, i32
  }
  func.func @transform_14(%arg0: i32, %arg1: i32) -> (i32, i32) {
    %c0_i32 = arith.constant 0 : i32
    %c0_i32_0 = arith.constant 0 : i32
    %c0_i32_1 = arith.constant 0 : i32
    return %c0_i32, %c0_i32_0 : i32, i32
  }
  func.func @transform_15(%arg0: i32, %arg1: i32) -> (i32, i32) {
    %c0_i32 = arith.constant 0 : i32
    %c0_i32_0 = arith.constant 0 : i32
    %c0_i32_1 = arith.constant 0 : i32
    return %c0_i32, %c0_i32_0 : i32, i32
  }
  func.func @transform_16(%arg0: i32, %arg1: i32) -> (i32, i32, i32) {
    %c0_i32 = arith.constant 0 : i32
    %c0_i32_0 = arith.constant 0 : i32
    return %arg0, %arg1, %c0_i32 : i32, i32, i32
  }
}

</mosaic_0001>

<llo_original>
// kernel: tpu_custom_call.1
$region0: #{tpu_custom_call.1}
  #allocation0 [shape = 'u32[]', space=smem, size = 0x4, offset = 0x4, fixed_abs, tag = 'smem constant byte address 0x4 - core index']
  #allocation1 [shape = 'u32[144,128]{1,0:T(1,128)}', space=vmem, size = 0x12000, scoped, tag = 'internal scratch']
  %s0 = inlined_call_operand.vmem [shape: f32[2,8,32], index: 0, kind: input, shape index: {}]
  %s1 = inlined_call_operand.vmem [shape: f32[2,8,32], index: 1, kind: input, shape index: {}]
  %s2 = inlined_call_operand.vmem [shape: f32[1,32], index: 2, kind: input, shape index: {}]
  %s3 = inlined_call_operand.vmem [shape: f32[1,32], index: 3, kind: input, shape index: {}]
  %s4 = inlined_call_operand.vmem [shape: bf16[32,32], index: 4, kind: input, shape index: {}]
  %s5 = inlined_call_operand.hbm [shape: f32[1,32], index: 5, kind: input, shape index: {}]
  %s6 = inlined_call_operand.vmem [shape: bf16[32,64], index: 6, kind: input, shape index: {}]
  %s7 = inlined_call_operand.hbm [shape: f32[1,64], index: 7, kind: input, shape index: {}]
  %s8 = inlined_call_operand.vmem [shape: bf16[4,8,32], index: 8, kind: input, shape index: {}]
  %s9 = inlined_call_operand.hbm [shape: f32[1,32], index: 9, kind: input, shape index: {}]
  %s10 = inlined_call_operand.vmem [shape: f32[1,32], index: 10, kind: input, shape index: {}]
  %s11 = inlined_call_operand.vmem [shape: f32[1,32], index: 11, kind: input, shape index: {}]
  %s12 = inlined_call_operand.vmem [shape: bf16[32,128], index: 12, kind: input, shape index: {}]
  %s13 = inlined_call_operand.vmem [shape: f32[1,128], index: 13, kind: input, shape index: {}]
  %s14 = inlined_call_operand.vmem [shape: bf16[128,32], index: 14, kind: input, shape index: {}]
  %s15 = inlined_call_operand.vmem [shape: f32[1,32], index: 15, kind: input, shape index: {}]
  %s16 = inlined_call_operand.hbm [shape: f32[2,8,32], index: 16, kind: output, shape index: {}]
  %s17 = sld [smem:[#allocation0]]
  $region109: #{tpu_custom_call.1} parent=0
    _
  %s19 = ssub.s32 1, %s17
  %s20 = scalar_select 0, %s19, %s17
  $region1: #{tpu_custom_call.1} parent=0
    #allocation2 [shape = 'u8[512]{0}', space=vmem, size = 0x400, scoped, tag = 'input window, operand 5, single buffered']
    #allocation3 [shape = 's32[2]{0}', space=sflag, size = 0x8, scoped, tag = 'scoped memory for tpu_custom_call.1']
    #allocation4 [shape = 's32[2]{0}', space=sflag, size = 0x8, scoped, tag = 'scoped memory for tpu_custom_call.1']
    #allocation5 [shape = 'u8[512]{0}', space=vmem, size = 0x400, scoped, tag = 'input window, operand 7, single buffered']
    #allocation6 [shape = 's32[1]{0}', space=sflag, size = 0x4, scoped, tag = 'scoped memory for tpu_custom_call.1']
    #allocation7 [shape = 'u8[512]{0}', space=vmem, size = 0x400, scoped, tag = 'input window, operand 9, single buffered']
    #allocation8 [shape = 'u8[8192]{0}', space=vmem, size = 0x2000, scoped, tag = 'output window, operand 0']
    %21 = vsyncpa [#allocation3], 0
    %22 = vsyncpa [#allocation6], 0
    %23 = vsyncpa [#allocation4], 0
    %s24 = scalar_lea.sflag [#allocation4], 1
    %25 = vsyncpa %s24, 0
    loop: start=0, step=1, limit=4
    $region2: #{tpu_custom_call.1} parent=1 // loop_pre_header
      _
    $region3: #{tpu_custom_call.1} parent=1 // loop_header
      %s27 = sphi 0, %s31
      %p28 = scmp.ge.s32.totalorder %s27, 4
      %s34 = sphi 0, %s46
      %s35 = sphi 0, %s42
      %s36 = sphi 0, %s34
      %s37 = sphi 0, %s35
      %s38 = sphi 0, %s36
      %s39 = sphi 0, %s37
      %s51 = sphi 0, %s53
      %s54 = sphi 0, %s51
      %s55 = sphi 0, %s54
      %s71 = sphi 0, %s55
      %s77 = sphi 0, %s79
      %s80 = sphi 0, %s77
      %s81 = sphi 0, %s80
      %s97 = sphi 0, %s81
      %s101 = sphi 0, %s101
      %s103 = sphi 0, %s101
      %s104 = sphi 0, %s103
      %s118 = sphi 0, %s104
      %s122 = sphi 0, %s122
      %s124 = sphi 0, %s122
      %s125 = sphi 0, %s124
      %s139 = sphi 0, %s125
      %s143 = sphi 0, %s143
      %s145 = sphi 0, %s143
      %s146 = sphi 0, %s145
      %s160 = sphi 0, %s146
      %s164 = sphi 0, %s164
      %s166 = sphi 0, %s164
      %s167 = sphi 0, %s166
      %s181 = sphi 0, %s167
      %s185 = sphi 0, %s185
      %s187 = sphi 0, %s185
      %s188 = sphi 0, %s187
      %s202 = sphi 0, %s188
      %s206 = sphi 0, %s206
      %s208 = sphi 0, %s206
      %s209 = sphi 0, %s208
      %s223 = sphi 0, %s209
      %s227 = sphi 0, %s227
      %s229 = sphi 0, %s227
      %s230 = sphi 0, %s229
      %s244 = sphi 0, %s230
      %s248 = sphi 0, %s248
      %s250 = sphi 0, %s248
      %s251 = sphi 0, %s250
      %s265 = sphi 0, %s251
      %s269 = sphi 0, %s269
      %s271 = sphi 0, %s269
      %s272 = sphi 0, %s271
      %s286 = sphi 0, %s272
      %s290 = sphi 0, %s290
      %s292 = sphi 0, %s290
      %s293 = sphi 0, %s292
      %s307 = sphi 0, %s293
      %s311 = sphi 0, %s311
      %s313 = sphi 0, %s311
      %s314 = sphi 0, %s313
      %s328 = sphi 0, %s314
      %s332 = sphi 0, %s332
      %s334 = sphi 0, %s332
      %s335 = sphi 0, %s334
      %s349 = sphi 0, %s335
      %s353 = sphi 0, %s353
      %s355 = sphi 0, %s353
      %s356 = sphi 0, %s355
      %s370 = sphi 0, %s356
      %s374 = sphi 0, %s374
      %s376 = sphi 0, %s374
      %s377 = sphi 0, %s376
      %s391 = sphi 0, %s377
      %s399 = sphi 0, %s401
      %s402 = sphi 0, %s399
      %s403 = sphi 0, %s402
      %s419 = sphi 0, %s403
    $region4: #{tpu_custom_call.1} parent=1 // loop_header_branch
      %30 = sbr.rel (%p28) target = $region8
    $region5: #{tpu_custom_call.1} parent=1 // loop_body
      %s32 = ssub.s32 %s27, 1
      %s33 = ssub.s32 %s27, 2
      %s40 = sadd.s32 1, %s35
      %p41 = scmp.ge.s32.totalorder %s40, 1
      %s42 = scalar_select %p41, 0, %s40
      %s43 = sadd.s32 1, %s34
      %s44 = scalar_select %p41, %s43, %s34
      %p45 = scmp.ge.s32.totalorder %s44, 2
      %s46 = scalar_select %p45, 0, %s44
      %s47 = ssub.s32 %s34, %s46
      %s48 = ssub.s32 %s35, %s42
      %s49 = sor.u32 %s47, %s48
      %p50 = scmp.eq.s32.totalorder %s49, 0
      %s52 = sadd.s32 %s51, 1
      %s53 = scalar_select %p50, %s51, %s52
      %p56 = pneg %p50
      %p57 = scmp.eq.s32.totalorder %s27, 1
      %p58 = por %p56, %p57
      %p59 = scmp.ne.s32.totalorder %s51, %s54
      %p60 = scmp.eq.s32.totalorder %s27, 0
      %p61 = por %p59, %p60
      %p62 = scmp.ne.s32.totalorder %s51, %s54
      %p63 = scmp.eq.s32.totalorder %s32, 1
      %p64 = por %p62, %p63
      %p65 = scmp.ne.s32.totalorder %s54, %s55
      %p66 = scmp.eq.s32.totalorder %s32, 0
      %p67 = por %p65, %p66
      %p68 = scmp.ne.s32.totalorder %s54, %s55
      %p69 = scmp.eq.s32.totalorder %s33, 1
      %p70 = por %p68, %p69
      %p72 = scmp.ne.s32.totalorder %s55, %s71
      %p73 = scmp.eq.s32.totalorder %s33, 0
      %p74 = por %p72, %p73
      %s75 = ssub.s32 %s34, %s46
      %p76 = scmp.eq.s32.totalorder %s75, 0
      %s78 = sadd.s32 %s77, 1
      %s79 = scalar_select %p76, %s77, %s78
      %p82 = pneg %p76
      %p83 = scmp.eq.s32.totalorder %s27, 1
      %p84 = por %p82, %p83
      %p85 = scmp.ne.s32.totalorder %s77, %s80
      %p86 = scmp.eq.s32.totalorder %s27, 0
      %p87 = por %p85, %p86
      %p88 = scmp.ne.s32.totalorder %s77, %s80
      %p89 = scmp.eq.s32.totalorder %s32, 1
      %p90 = por %p88, %p89
      %p91 = scmp.ne.s32.totalorder %s80, %s81
      %p92 = scmp.eq.s32.totalorder %s32, 0
      %p93 = por %p91, %p92
      %p94 = scmp.ne.s32.totalorder %s80, %s81
      %p95 = scmp.eq.s32.totalorder %s33, 1
      %p96 = por %p94, %p95
      %p98 = scmp.ne.s32.totalorder %s81, %s97
      %p99 = scmp.eq.s32.totalorder %s33, 0
      %p100 = por %p98, %p99
      %s102 = sadd.s32 %s101, 1
      %p105 = scmp.eq.s32.totalorder %s27, 1
      %p106 = scmp.ne.s32.totalorder %s101, %s103
      %p107 = scmp.eq.s32.totalorder %s27, 0
      %p108 = por %p106, %p107
      %p109 = scmp.ne.s32.totalorder %s101, %s103
      %p110 = scmp.eq.s32.totalorder %s32, 1
      %p111 = por %p109, %p110
      %p112 = scmp.ne.s32.totalorder %s103, %s104
      %p113 = scmp.eq.s32.totalorder %s32, 0
      %p114 = por %p112, %p113
      %p115 = scmp.ne.s32.totalorder %s103, %s104
      %p116 = scmp.eq.s32.totalorder %s33, 1
      %p117 = por %p115, %p116
      %p119 = scmp.ne.s32.totalorder %s104, %s118
      %p120 = scmp.eq.s32.totalorder %s33, 0
      %p121 = por %p119, %p120
      %s123 = sadd.s32 %s122, 1
      %p126 = scmp.eq.s32.totalorder %s27, 1
      %p127 = scmp.ne.s32.totalorder %s122, %s124
      %p128 = scmp.eq.s32.totalorder %s27, 0
      %p129 = por %p127, %p128
      %p130 = scmp.ne.s32.totalorder %s122, %s124
      %p131 = scmp.eq.s32.totalorder %s32, 1
      %p132 = por %p130, %p131
      %p133 = scmp.ne.s32.totalorder %s124, %s125
      %p134 = scmp.eq.s32.totalorder %s32, 0
      %p135 = por %p133, %p134
      %p136 = scmp.ne.s32.totalorder %s124, %s125
      %p137 = scmp.eq.s32.totalorder %s33, 1
      %p138 = por %p136, %p137
      %p140 = scmp.ne.s32.totalorder %s125, %s139
      %p141 = scmp.eq.s32.totalorder %s33, 0
      %p142 = por %p140, %p141
      %s144 = sadd.s32 %s143, 1
      %p147 = scmp.eq.s32.totalorder %s27, 1
      %p148 = scmp.ne.s32.totalorder %s143, %s145
      %p149 = scmp.eq.s32.totalorder %s27, 0
      %p150 = por %p148, %p149
      %p151 = scmp.ne.s32.totalorder %s143, %s145
      %p152 = scmp.eq.s32.totalorder %s32, 1
      %p153 = por %p151, %p152
      %p154 = scmp.ne.s32.totalorder %s145, %s146
      %p155 = scmp.eq.s32.totalorder %s32, 0
      %p156 = por %p154, %p155
      %p157 = scmp.ne.s32.totalorder %s145, %s146
      %p158 = scmp.eq.s32.totalorder %s33, 1
      %p159 = por %p157, %p158
      %p161 = scmp.ne.s32.totalorder %s146, %s160
      %p162 = scmp.eq.s32.totalorder %s33, 0
      %p163 = por %p161, %p162
      %s165 = sadd.s32 %s164, 1
      %p168 = scmp.eq.s32.totalorder %s27, 1
      %p169 = scmp.ne.s32.totalorder %s164, %s166
      %p170 = scmp.eq.s32.totalorder %s27, 0
      %p171 = por %p169, %p170
      %p172 = scmp.ne.s32.totalorder %s164, %s166
      %p173 = scmp.eq.s32.totalorder %s32, 1
      %p174 = por %p172, %p173
      %p175 = scmp.ne.s32.totalorder %s166, %s167
      %p176 = scmp.eq.s32.totalorder %s32, 0
      %p177 = por %p175, %p176
      %p178 = scmp.ne.s32.totalorder %s166, %s167
      %p179 = scmp.eq.s32.totalorder %s33, 1
      %p180 = por %p178, %p179
      %p182 = scmp.ne.s32.totalorder %s167, %s181
      %p183 = scmp.eq.s32.totalorder %s33, 0
      %p184 = por %p182, %p183
      %s186 = sadd.s32 %s185, 1
      %p189 = scmp.eq.s32.totalorder %s27, 1
      %p190 = scmp.ne.s32.totalorder %s185, %s187
      %p191 = scmp.eq.s32.totalorder %s27, 0
      %p192 = por %p190, %p191
      %p193 = scmp.ne.s32.totalorder %s185, %s187
      %p194 = scmp.eq.s32.totalorder %s32, 1
      %p195 = por %p193, %p194
      %p196 = scmp.ne.s32.totalorder %s187, %s188
      %p197 = scmp.eq.s32.totalorder %s32, 0
      %p198 = por %p196, %p197
      %p199 = scmp.ne.s32.totalorder %s187, %s188
      %p200 = scmp.eq.s32.totalorder %s33, 1
      %p201 = por %p199, %p200
      %p203 = scmp.ne.s32.totalorder %s188, %s202
      %p204 = scmp.eq.s32.totalorder %s33, 0
      %p205 = por %p203, %p204
      %s207 = sadd.s32 %s206, 1
      %p210 = scmp.eq.s32.totalorder %s27, 1
      %p211 = scmp.ne.s32.totalorder %s206, %s208
      %p212 = scmp.eq.s32.totalorder %s27, 0
      %p213 = por %p211, %p212
      %p214 = scmp.ne.s32.totalorder %s206, %s208
      %p215 = scmp.eq.s32.totalorder %s32, 1
      %p216 = por %p214, %p215
      %p217 = scmp.ne.s32.totalorder %s208, %s209
      %p218 = scmp.eq.s32.totalorder %s32, 0
      %p219 = por %p217, %p218
      %p220 = scmp.ne.s32.totalorder %s208, %s209
      %p221 = scmp.eq.s32.totalorder %s33, 1
      %p222 = por %p220, %p221
      %p224 = scmp.ne.s32.totalorder %s209, %s223
      %p225 = scmp.eq.s32.totalorder %s33, 0
      %p226 = por %p224, %p225
      %s228 = sadd.s32 %s227, 1
      %p231 = scmp.eq.s32.totalorder %s27, 1
      %p232 = scmp.ne.s32.totalorder %s227, %s229
      %p233 = scmp.eq.s32.totalorder %s27, 0
      %p234 = por %p232, %p233
      %p235 = scmp.ne.s32.totalorder %s227, %s229
      %p236 = scmp.eq.s32.totalorder %s32, 1
      %p237 = por %p235, %p236
      %p238 = scmp.ne.s32.totalorder %s229, %s230
      %p239 = scmp.eq.s32.totalorder %s32, 0
      %p240 = por %p238, %p239
      %p241 = scmp.ne.s32.totalorder %s229, %s230
      %p242 = scmp.eq.s32.totalorder %s33, 1
      %p243 = por %p241, %p242
      %p245 = scmp.ne.s32.totalorder %s230, %s244
      %p246 = scmp.eq.s32.totalorder %s33, 0
      %p247 = por %p245, %p246
      %s249 = sadd.s32 %s248, 1
      %p252 = scmp.eq.s32.totalorder %s27, 1
      %p253 = scmp.ne.s32.totalorder %s248, %s250
      %p254 = scmp.eq.s32.totalorder %s27, 0
      %p255 = por %p253, %p254
      %p256 = scmp.ne.s32.totalorder %s248, %s250
      %p257 = scmp.eq.s32.totalorder %s32, 1
      %p258 = por %p256, %p257
      %p259 = scmp.ne.s32.totalorder %s250, %s251
      %p260 = scmp.eq.s32.totalorder %s32, 0
      %p261 = por %p259, %p260
      %p262 = scmp.ne.s32.totalorder %s250, %s251
      %p263 = scmp.eq.s32.totalorder %s33, 1
      %p264 = por %p262, %p263
      %p266 = scmp.ne.s32.totalorder %s251, %s265
      %p267 = scmp.eq.s32.totalorder %s33, 0
      %p268 = por %p266, %p267
      %s270 = sadd.s32 %s269, 1
      %p273 = scmp.eq.s32.totalorder %s27, 1
      %p274 = scmp.ne.s32.totalorder %s269, %s271
      %p275 = scmp.eq.s32.totalorder %s27, 0
      %p276 = por %p274, %p275
      %p277 = scmp.ne.s32.totalorder %s269, %s271
      %p278 = scmp.eq.s32.totalorder %s32, 1
      %p279 = por %p277, %p278
      %p280 = scmp.ne.s32.totalorder %s271, %s272
      %p281 = scmp.eq.s32.totalorder %s32, 0
      %p282 = por %p280, %p281
      %p283 = scmp.ne.s32.totalorder %s271, %s272
      %p284 = scmp.eq.s32.totalorder %s33, 1
      %p285 = por %p283, %p284
      %p287 = scmp.ne.s32.totalorder %s272, %s286
      %p288 = scmp.eq.s32.totalorder %s33, 0
      %p289 = por %p287, %p288
      %s291 = sadd.s32 %s290, 1
      %p294 = scmp.eq.s32.totalorder %s27, 1
      %p295 = scmp.ne.s32.totalorder %s290, %s292
      %p296 = scmp.eq.s32.totalorder %s27, 0
      %p297 = por %p295, %p296
      %p298 = scmp.ne.s32.totalorder %s290, %s292
      %p299 = scmp.eq.s32.totalorder %s32, 1
      %p300 = por %p298, %p299
      %p301 = scmp.ne.s32.totalorder %s292, %s293
      %p302 = scmp.eq.s32.totalorder %s32, 0
      %p303 = por %p301, %p302
      %p304 = scmp.ne.s32.totalorder %s292, %s293
      %p305 = scmp.eq.s32.totalorder %s33, 1
      %p306 = por %p304, %p305
      %p308 = scmp.ne.s32.totalorder %s293, %s307
      %p309 = scmp.eq.s32.totalorder %s33, 0
      %p310 = por %p308, %p309
      %s312 = sadd.s32 %s311, 1
      %p315 = scmp.eq.s32.totalorder %s27, 1
      %p316 = scmp.ne.s32.totalorder %s311, %s313
      %p317 = scmp.eq.s32.totalorder %s27, 0
      %p318 = por %p316, %p317
      %p319 = scmp.ne.s32.totalorder %s311, %s313
      %p320 = scmp.eq.s32.totalorder %s32, 1
      %p321 = por %p319, %p320
      %p322 = scmp.ne.s32.totalorder %s313, %s314
      %p323 = scmp.eq.s32.totalorder %s32, 0
      %p324 = por %p322, %p323
      %p325 = scmp.ne.s32.totalorder %s313, %s314
      %p326 = scmp.eq.s32.totalorder %s33, 1
      %p327 = por %p325, %p326
      %p329 = scmp.ne.s32.totalorder %s314, %s328
      %p330 = scmp.eq.s32.totalorder %s33, 0
      %p331 = por %p329, %p330
      %s333 = sadd.s32 %s332, 1
      %p336 = scmp.eq.s32.totalorder %s27, 1
      %p337 = scmp.ne.s32.totalorder %s332, %s334
      %p338 = scmp.eq.s32.totalorder %s27, 0
      %p339 = por %p337, %p338
      %p340 = scmp.ne.s32.totalorder %s332, %s334
      %p341 = scmp.eq.s32.totalorder %s32, 1
      %p342 = por %p340, %p341
      %p343 = scmp.ne.s32.totalorder %s334, %s335
      %p344 = scmp.eq.s32.totalorder %s32, 0
      %p345 = por %p343, %p344
      %p346 = scmp.ne.s32.totalorder %s334, %s335
      %p347 = scmp.eq.s32.totalorder %s33, 1
      %p348 = por %p346, %p347
      %p350 = scmp.ne.s32.totalorder %s335, %s349
      %p351 = scmp.eq.s32.totalorder %s33, 0
      %p352 = por %p350, %p351
      %s354 = sadd.s32 %s353, 1
      %p357 = scmp.eq.s32.totalorder %s27, 1
      %p358 = scmp.ne.s32.totalorder %s353, %s355
      %p359 = scmp.eq.s32.totalorder %s27, 0
      %p360 = por %p358, %p359
      %p361 = scmp.ne.s32.totalorder %s353, %s355
      %p362 = scmp.eq.s32.totalorder %s32, 1
      %p363 = por %p361, %p362
      %p364 = scmp.ne.s32.totalorder %s355, %s356
      %p365 = scmp.eq.s32.totalorder %s32, 0
      %p366 = por %p364, %p365
      %p367 = scmp.ne.s32.totalorder %s355, %s356
      %p368 = scmp.eq.s32.totalorder %s33, 1
      %p369 = por %p367, %p368
      %p371 = scmp.ne.s32.totalorder %s356, %s370
      %p372 = scmp.eq.s32.totalorder %s33, 0
      %p373 = por %p371, %p372
      %s375 = sadd.s32 %s374, 1
      %p378 = scmp.eq.s32.totalorder %s27, 1
      %p379 = scmp.ne.s32.totalorder %s374, %s376
      %p380 = scmp.eq.s32.totalorder %s27, 0
      %p381 = por %p379, %p380
      %p382 = scmp.ne.s32.totalorder %s374, %s376
      %p383 = scmp.eq.s32.totalorder %s32, 1
      %p384 = por %p382, %p383
      %p385 = scmp.ne.s32.totalorder %s376, %s377
      %p386 = scmp.eq.s32.totalorder %s32, 0
      %p387 = por %p385, %p386
      %p388 = scmp.ne.s32.totalorder %s376, %s377
      %p389 = scmp.eq.s32.totalorder %s33, 1
      %p390 = por %p388, %p389
      %p392 = scmp.ne.s32.totalorder %s377, %s391
      %p393 = scmp.eq.s32.totalorder %s33, 0
      %p394 = por %p392, %p393
      %s395 = ssub.s32 %s34, %s46
      %s396 = ssub.s32 %s35, %s42
      %s397 = sor.u32 %s395, %s396
      %p398 = scmp.eq.s32.totalorder %s397, 0
      %s400 = sadd.s32 %s399, 1
      %s401 = scalar_select %p398, %s399, %s400
      %p404 = pneg %p398
      %p405 = scmp.eq.s32.totalorder %s27, 1
      %p406 = por %p404, %p405
      %p407 = scmp.ne.s32.totalorder %s399, %s402
      %p408 = scmp.eq.s32.totalorder %s27, 0
      %p409 = por %p407, %p408
      %p410 = scmp.ne.s32.totalorder %s399, %s402
      %p411 = scmp.eq.s32.totalorder %s32, 1
      %p412 = por %p410, %p411
      %p413 = scmp.ne.s32.totalorder %s402, %s403
      %p414 = scmp.eq.s32.totalorder %s32, 0
      %p415 = por %p413, %p414
      %p416 = scmp.ne.s32.totalorder %s402, %s403
      %p417 = scmp.eq.s32.totalorder %s33, 1
      %p418 = por %p416, %p417
      %p420 = scmp.ne.s32.totalorder %s403, %s419
      %p421 = scmp.eq.s32.totalorder %s33, 0
      %p422 = por %p420, %p421
      %p423 = scmp.le.s32.totalorder 1, %s27
      %p424 = scmp.lt.s32.totalorder %s27, 3
      %p425 = pnand %p423, %p424
      %p426 = pneg %p425
      // Predicated region
      $region9: #{tpu_custom_call.1} parent=5 // pred_check
        _
      $region10: #{tpu_custom_call.1} parent=5 // pred_check_branch
        %428 = sbr.rel (%p425) target = $region12
      $region11: #{tpu_custom_call.1} parent=5 // pred_region
        %s429 = ssub.s32 %s27, 1
        // Predicated region
        $region13: #{tpu_custom_call.1} parent=11 // pred_check
          %p430 = pneg %p114
        $region14: #{tpu_custom_call.1} parent=11 // pred_check_branch
          %432 = sbr.rel (%p430) target = $region16
        $region15: #{tpu_custom_call.1} parent=11 // pred_region
          _
        $region16: #{tpu_custom_call.1} parent=11 // pred_fallthru
          _
        // Predicated region
        $region17: #{tpu_custom_call.1} parent=11 // pred_check
          %p433 = pneg %p135
        $region18: #{tpu_custom_call.1} parent=11 // pred_check_branch
          %435 = sbr.rel (%p433) target = $region20
        $region19: #{tpu_custom_call.1} parent=11 // pred_region
          _
        $region20: #{tpu_custom_call.1} parent=11 // pred_fallthru
          _
        // Predicated region
        $region21: #{tpu_custom_call.1} parent=11 // pred_check
          %p436 = pneg %p156
        $region22: #{tpu_custom_call.1} parent=11 // pred_check_branch
          %438 = sbr.rel (%p436) target = $region24
        $region23: #{tpu_custom_call.1} parent=11 // pred_region
          _
        $region24: #{tpu_custom_call.1} parent=11 // pred_fallthru
          _
        // Predicated region
        $region25: #{tpu_custom_call.1} parent=11 // pred_check
          %p439 = pneg %p177
        $region26: #{tpu_custom_call.1} parent=11 // pred_check_branch
          %441 = sbr.rel (%p439) target = $region28
        $region27: #{tpu_custom_call.1} parent=11 // pred_region
          %s443 = ssub.s32 16, 16
          %444 = vsyncadd [#allocation3], %s443
          %s446 = sshll.u32 [#allocation2], 4
          %s447 = int_to_ptr.vmem [resolvable:$true] %s446
          %449 = dma.hbm_to_vmem [thread:$0]  %s5, 16, %s447, [#allocation3]
        $region28: #{tpu_custom_call.1} parent=11 // pred_fallthru
          _
        // Predicated region
        $region29: #{tpu_custom_call.1} parent=11 // pred_check
          %p450 = pneg %p198
        $region30: #{tpu_custom_call.1} parent=11 // pred_check_branch
          %452 = sbr.rel (%p450) target = $region32
        $region31: #{tpu_custom_call.1} parent=11 // pred_region
          _
        $region32: #{tpu_custom_call.1} parent=11 // pred_fallthru
          _
        // Predicated region
        $region33: #{tpu_custom_call.1} parent=11 // pred_check
          %p453 = pneg %p219
        $region34: #{tpu_custom_call.1} parent=11 // pred_check_branch
          %455 = sbr.rel (%p453) target = $region36
        $region35: #{tpu_custom_call.1} parent=11 // pred_region
          %s457 = ssub.s32 16, 16
          %458 = vsyncadd [#allocation6], %s457
          %s460 = sshll.u32 [#allocation5], 4
          %s461 = int_to_ptr.vmem [resolvable:$true] %s460
          %463 = dma.hbm_to_vmem [thread:$0]  %s7, 16, %s461, [#allocation6]
        $region36: #{tpu_custom_call.1} parent=11 // pred_fallthru
          _
        // Predicated region
        $region37: #{tpu_custom_call.1} parent=11 // pred_check
          %p464 = pneg %p240
        $region38: #{tpu_custom_call.1} parent=11 // pred_check_branch
          %466 = sbr.rel (%p464) target = $region40
        $region39: #{tpu_custom_call.1} parent=11 // pred_region
          _
        $region40: #{tpu_custom_call.1} parent=11 // pred_fallthru
          _
        // Predicated region
        $region41: #{tpu_custom_call.1} parent=11 // pred_check
          %p467 = pneg %p261
        $region42: #{tpu_custom_call.1} parent=11 // pred_check_branch
          %469 = sbr.rel (%p467) target = $region44
        $region43: #{tpu_custom_call.1} parent=11 // pred_region
          %s471 = ssub.s32 16, 16
          %472 = vsyncadd [#allocation6], %s471
          %s474 = sshll.u32 [#allocation7], 4
          %s475 = int_to_ptr.vmem [resolvable:$true] %s474
          %477 = dma.hbm_to_vmem [thread:$0]  %s9, 16, %s475, [#allocation6]
        $region44: #{tpu_custom_call.1} parent=11 // pred_fallthru
          _
        // Predicated region
        $region45: #{tpu_custom_call.1} parent=11 // pred_check
          %p478 = pneg %p282
        $region46: #{tpu_custom_call.1} parent=11 // pred_check_branch
          %480 = sbr.rel (%p478) target = $region48
        $region47: #{tpu_custom_call.1} parent=11 // pred_region
          _
        $region48: #{tpu_custom_call.1} parent=11 // pred_fallthru
          _
        // Predicated region
        $region49: #{tpu_custom_call.1} parent=11 // pred_check
          %p481 = pneg %p303
        $region50: #{tpu_custom_call.1} parent=11 // pred_check_branch
          %483 = sbr.rel (%p481) target = $region52
        $region51: #{tpu_custom_call.1} parent=11 // pred_region
          _
        $region52: #{tpu_custom_call.1} parent=11 // pred_fallthru
          _
        // Predicated region
        $region53: #{tpu_custom_call.1} parent=11 // pred_check
          %p484 = pneg %p324
        $region54: #{tpu_custom_call.1} parent=11 // pred_check_branch
          %486 = sbr.rel (%p484) target = $region56
        $region55: #{tpu_custom_call.1} parent=11 // pred_region
          _
        $region56: #{tpu_custom_call.1} parent=11 // pred_fallthru
          _
        // Predicated region
        $region57: #{tpu_custom_call.1} parent=11 // pred_check
          %p487 = pneg %p345
        $region58: #{tpu_custom_call.1} parent=11 // pred_check_branch
          %489 = sbr.rel (%p487) target = $region60
        $region59: #{tpu_custom_call.1} parent=11 // pred_region
          _
        $region60: #{tpu_custom_call.1} parent=11 // pred_fallthru
          _
        // Predicated region
        $region61: #{tpu_custom_call.1} parent=11 // pred_check
          %p490 = pneg %p366
        $region62: #{tpu_custom_call.1} parent=11 // pred_check_branch
          %492 = sbr.rel (%p490) target = $region64
        $region63: #{tpu_custom_call.1} parent=11 // pred_region
          _
        $region64: #{tpu_custom_call.1} parent=11 // pred_fallthru
          _
        // Predicated region
        $region65: #{tpu_custom_call.1} parent=11 // pred_check
          %p493 = pneg %p387
        $region66: #{tpu_custom_call.1} parent=11 // pred_check_branch
          %495 = sbr.rel (%p493) target = $region68
        $region67: #{tpu_custom_call.1} parent=11 // pred_region
          _
        $region68: #{tpu_custom_call.1} parent=11 // pred_fallthru
          _
      $region12: #{tpu_custom_call.1} parent=5 // pred_fallthru
        _
      %p496 = scmp.lt.s32.totalorder %s27, 2
      // Predicated region
      $region69: #{tpu_custom_call.1} parent=5 // pred_check
        %p497 = pneg %p496
      $region70: #{tpu_custom_call.1} parent=5 // pred_check_branch
        %499 = sbr.rel (%p497) target = $region72
      $region71: #{tpu_custom_call.1} parent=5 // pred_region
        // Predicated region
        $region73: #{tpu_custom_call.1} parent=71 // pred_check
          %p500 = pneg %p61
        $region74: #{tpu_custom_call.1} parent=71 // pred_check_branch
          %502 = sbr.rel (%p500) target = $region76
        $region75: #{tpu_custom_call.1} parent=71 // pred_region
          %p503 = scmp.lt.s32.totalorder %s34, 1
          %s504 = scalar_select %p503, %s34, 1
          %p505 = scmp.lt.s32.totalorder %s35, 0
          %s506 = scalar_select %p505, %s35, 0
          %s507 = sadd.s32 %s506, %s504
          %s508 = smul.addr %s507, 8
          %s509 = scalar_lea.vmem %s0, %s508
        $region76: #{tpu_custom_call.1} parent=71 // pred_fallthru
          _
        // Predicated region
        $region77: #{tpu_custom_call.1} parent=71 // pred_check
          %p510 = pneg %p87
        $region78: #{tpu_custom_call.1} parent=71 // pred_check_branch
          %512 = sbr.rel (%p510) target = $region80
        $region79: #{tpu_custom_call.1} parent=71 // pred_region
          %p513 = scmp.lt.s32.totalorder %s34, 1
          %s514 = scalar_select %p513, %s34, 1
          %s515 = smul.addr %s514, 8
          %s516 = scalar_lea.vmem %s1, %s515
        $region80: #{tpu_custom_call.1} parent=71 // pred_fallthru
          _
      $region72: #{tpu_custom_call.1} parent=5 // pred_fallthru
        _
      %p517 = scmp.le.s32.totalorder 1, %s27
      %p518 = scmp.lt.s32.totalorder %s27, 3
      %p519 = pnand %p517, %p518
      %p520 = pneg %p519
      // Predicated region
      $region81: #{tpu_custom_call.1} parent=5 // pred_check
        _
      $region82: #{tpu_custom_call.1} parent=5 // pred_check_branch
        %522 = sbr.rel (%p519) target = $region84
      $region83: #{tpu_custom_call.1} parent=5 // pred_region
        %s523 = ssub.s32 %s27, 1
        // Predicated region
        $region85: #{tpu_custom_call.1} parent=83 // pred_check
          %p524 = pneg %p177
        $region86: #{tpu_custom_call.1} parent=83 // pred_check_branch
          %526 = sbr.rel (%p524) target = $region88
        $region87: #{tpu_custom_call.1} parent=83 // pred_region
          %527 = dma.done [#allocation3], 16
        $region88: #{tpu_custom_call.1} parent=83 // pred_fallthru
          _
        // Predicated region
        $region89: #{tpu_custom_call.1} parent=83 // pred_check
          %p528 = pneg %p219
        $region90: #{tpu_custom_call.1} parent=83 // pred_check_branch
          %530 = sbr.rel (%p528) target = $region92
        $region91: #{tpu_custom_call.1} parent=83 // pred_region
          %531 = dma.done [#allocation6], 16
        $region92: #{tpu_custom_call.1} parent=83 // pred_fallthru
          _
        // Predicated region
        $region93: #{tpu_custom_call.1} parent=83 // pred_check
          %p532 = pneg %p261
        $region94: #{tpu_custom_call.1} parent=83 // pred_check_branch
          %534 = sbr.rel (%p532) target = $region96
        $region95: #{tpu_custom_call.1} parent=83 // pred_region
          %535 = dma.done [#allocation6], 16
        $region96: #{tpu_custom_call.1} parent=83 // pred_fallthru
          _
        %p536 = scmp.lt.s32.totalorder %s36, 1
        %s537 = scalar_select %p536, %s36, 1
        %p538 = scmp.lt.s32.totalorder %s37, 0
        %s539 = scalar_select %p538, %s37, 0
        %s540 = sadd.s32 %s539, %s537
        %s541 = smul.addr %s540, 8
        %s542 = scalar_lea.vmem %s0, %s541
        %p543 = pneg %p67
        %p544 = pneg %p64
        %p545 = scmp.lt.s32.totalorder %s36, 1
        %s546 = scalar_select %p545, %s36, 1
        %s547 = smul.addr %s546, 8
        %s548 = scalar_lea.vmem %s1, %s547
        %p549 = pneg %p93
        %p550 = pneg %p90
        %p551 = pneg %p114
        %p552 = pneg %p111
        %p553 = pneg %p135
        %p554 = pneg %p132
        %p555 = pneg %p156
        %p556 = pneg %p153
        %p557 = pneg %p177
        %p558 = pneg %p174
        %p559 = pneg %p198
        %p560 = pneg %p195
        %p561 = pneg %p219
        %p562 = pneg %p216
        %p563 = pneg %p240
        %p564 = pneg %p237
        %p565 = pneg %p261
        %p566 = pneg %p258
        %p567 = pneg %p282
        %p568 = pneg %p279
        %p569 = pneg %p303
        %p570 = pneg %p300
        %p571 = pneg %p324
        %p572 = pneg %p321
        %p573 = pneg %p345
        %p574 = pneg %p342
        %p575 = pneg %p366
        %p576 = pneg %p363
        %p577 = pneg %p387
        %p578 = pneg %p384
        %p579 = pneg %p415
        %p580 = pneg %p412
        %s581 = sand.u32 %s402, 1
        %s582 = scalar_lea.sflag [#allocation4], %s581
        %s583 = sand.u32 %s402, 1
        %s584 = smul.addr %s583, 8
        %s585 = scalar_lea.vmem [#allocation8], %s584
        %p586 = scmp.lt.s32.totalorder %s36, 1
        %s587 = scalar_select %p586, %s36, 1
        %p588 = scmp.lt.s32.totalorder %s37, 0
        %s589 = scalar_select %p588, %s37, 0
        %s590 = sadd.s32 %s589, %s587
        %s591 = smul.addr %s590, 8
        %s592 = scalar_lea.vmem %s0, %s591
        %p593 = scmp.lt.s32.totalorder %s36, 1
        %s594 = scalar_select %p593, %s36, 1
        %s595 = smul.addr %s594, 8
        %s596 = scalar_lea.vmem %s1, %s595
        %v598 = vld [vmem:[%s592] sm:$0xff]
        %v599 = vld [vmem:[%s596] sm:$0xff]
        %v600 = vld [vmem:[%s2] sm:$0x1]
        %v601 = vld [vmem:[%s3] sm:$0x1]
        %vm602 = vcmask 261120
        %v603 = vsel %vm602, %v598, 0.0
        %604 = vadd.xlane.f32.xlu0 %v603
        %v605 = vpop.xlane.xlu0 %604
        %v606 = vrcp.pop 32.0
        %v607 = vmul.f32 %v605, %v606
        %v608 = vsub.f32 %v598, %v607
        %v609 = vmul.f32 %v608, %v608
        %v610 = vsel %vm602, %v609, 0.0
        %611 = vadd.xlane.f32.xlu0 %v610
        %v612 = vpop.xlane.xlu0 %611
        %v613 = vmul.f32 %v612, %v606
        %v614 = vadd.f32 %v613, 1e-05
        %v615 = vrsqrt.pop %v614
        %v616 = vmul.f32 %v608, %v615
        %v618 = vlaneseq
        %v619 = vshrl.u32 %v618, 7
        %v620 = vsub.s32 0, %v619
        %v621 = vrot.slane %v600, %v620
        %v623 = vmul.f32 %v616, %v621
        %v625 = vlaneseq
        %v626 = vshrl.u32 %v625, 7
        %v627 = vsub.s32 0, %v626
        %v628 = vrot.slane %v601, %v627
        %v630 = vadd.f32 %v623, %v628
        %v631 = vsel %vm602, %v599, 0.0
        %632 = vadd.xlane.f32.xlu0 %v631
        %v633 = vpop.xlane.xlu0 %632
        %v634 = vmul.f32 %v633, %v606
        %v635 = vsub.f32 %v599, %v634
        %v636 = vmul.f32 %v635, %v635
        %v637 = vsel %vm602, %v636, 0.0
        %638 = vadd.xlane.f32.xlu0 %v637
        %v639 = vpop.xlane.xlu0 %638
        %v640 = vmul.f32 %v639, %v606
        %v641 = vadd.f32 %v640, 1e-05
        %v642 = vrsqrt.pop %v641
        %v643 = vmul.f32 %v635, %v642
        %v644 = vmul.f32 %v643, %v621
        %v645 = vadd.f32 %v644, %v628
        %v646 = vpack.c.bf16 %v630, %v630
        %v647 = vld [vmem:[%s4] sm:$0xf]
        %v648 = vld [vmem:[%s4 + $0x4] sm:$0xf]
        %v649 = vld [vmem:[%s4 + $0x8] sm:$0xf]
        %v650 = vld [vmem:[%s4 + $0xc] sm:$0xf]
        %v651 = vld [vmem:[#allocation2] sm:$0x1]
        %v653 = vlaneseq
        %v654 = vshrl.u32 %v653, 7
        %v655 = vsub.s32 0, %v654
        %v656 = vrot.slane %v651, %v655
        %v662 = vunpack.c.l.b16 %v647
        %v663 = vunpack.c.l.b16 %v648
        %v664 = vunpack.c.l.b16 %v649
        %v665 = vunpack.c.l.b16 %v650
        %v666 = vpack.c.b16 %v663, %v662
        %v667 = vpack.c.b16 %v665, %v664
        %v671 = vsel %vm602, %v646, 0
        %673 = vmatprep.subr.bf16.mxu0 0
        %674 = vmatpush1.bf16.msra.mxu0 %v666
        %675 = vmatprep.subr.bf16.mxu0 0
        %676 = vmatpush1.bf16.msra.mxu0 %v667
        %677 = vmatprep.subr.bf16.mxu0 0
        %678 = vmatpush1.bf16.msra.mxu0 0
        %679 = vmatprep.subr.bf16.mxu0 0
        %680 = vmatpush1.bf16.msra.mxu0 0
        %681 = vmatprep.subr.bf16.mxu0 0
        %682 = vmatpush1.bf16.msra.mxu0 0
        %683 = vmatprep.subr.bf16.mxu0 0
        %684 = vmatpush1.bf16.msra.mxu0 0
        %685 = vmatprep.subr.bf16.mxu0 0
        %686 = vmatpush1.bf16.msra.mxu0 0
        %687 = vmatprep.subr.bf16.mxu0 0
        %688 = vmatpush1.bf16.msra.mxu0 0
        %689 = vmatprep.subr.bf16.mxu0 0
        %690 = vmatpush1.bf16.msra.mxu0 0
        %691 = vmatprep.subr.bf16.mxu0 0
        %692 = vmatpush1.bf16.msra.mxu0 0
        %693 = vmatprep.subr.bf16.mxu0 0
        %694 = vmatpush1.bf16.msra.mxu0 0
        %695 = vmatprep.subr.bf16.mxu0 0
        %696 = vmatpush1.bf16.msra.mxu0 0
        %697 = vmatprep.subr.bf16.mxu0 0
        %698 = vmatpush1.bf16.msra.mxu0 0
        %699 = vmatprep.subr.bf16.mxu0 0
        %700 = vmatpush1.bf16.msra.mxu0 0
        %701 = vmatprep.subr.bf16.mxu0 0
        %702 = vmatpush1.bf16.msra.mxu0 0
        %703 = vmatprep.subr.bf16.mxu0 0
        %704 = vmatpush1.bf16.msra.mxu0 0
        %705 = vmatprep.mubr.bf16.mxu0 0
        %706 = vmatmul.mubr.bf16.gmra.mrb[0].mxu0 %v671
        %v707 = vpop.f32.mrb[0].mxu0
        %v708 = vadd.f32 %v656, %v707
        %v709 = vpop.f32.mrb[0].mxu0
        %v710 = vpop.f32.mrb[0].mxu0
        %v711 = vpop.f32.mrb[0].mxu0
        %712 = vdwg.mxu0
        %v713 = vpack.c.bf16 %v645, %v645
        %v714 = vld [vmem:[%s6] sm:$0xf]
        %v715 = vld [vmem:[%s6 + $0x4] sm:$0xf]
        %v716 = vld [vmem:[%s6 + $0x8] sm:$0xf]
        %v717 = vld [vmem:[%s6 + $0xc] sm:$0xf]
        %v718 = vld [vmem:[#allocation5] sm:$0x1]
        %v720 = vlaneseq
        %v721 = vshrl.u32 %v720, 7
        %v722 = vsub.s32 0, %v721
        %v723 = vrot.slane %v718, %v722
        %v729 = vunpack.c.l.b16 %v714
        %v730 = vunpack.c.l.b16 %v715
        %v731 = vunpack.c.l.b16 %v716
        %v732 = vunpack.c.l.b16 %v717
        %v733 = vpack.c.b16 %v730, %v729
        %v734 = vpack.c.b16 %v732, %v731
        %v738 = vsel %vm602, %v713, 0
        %740 = vmatprep.subr.bf16.mxu0 0
        %741 = vmatpush1.bf16.msra.mxu0 %v733
        %742 = vmatprep.subr.bf16.mxu0 0
        %743 = vmatpush1.bf16.msra.mxu0 %v734
        %744 = vmatprep.subr.bf16.mxu0 0
        %745 = vmatpush1.bf16.msra.mxu0 0
        %746 = vmatprep.subr.bf16.mxu0 0
        %747 = vmatpush1.bf16.msra.mxu0 0
        %748 = vmatprep.subr.bf16.mxu0 0
        %749 = vmatpush1.bf16.msra.mxu0 0
        %750 = vmatprep.subr.bf16.mxu0 0
        %751 = vmatpush1.bf16.msra.mxu0 0
        %752 = vmatprep.subr.bf16.mxu0 0
        %753 = vmatpush1.bf16.msra.mxu0 0
        %754 = vmatprep.subr.bf16.mxu0 0
        %755 = vmatpush1.bf16.msra.mxu0 0
        %756 = vmatprep.subr.bf16.mxu0 0
        %757 = vmatpush1.bf16.msra.mxu0 0
        %758 = vmatprep.subr.bf16.mxu0 0
        %759 = vmatpush1.bf16.msra.mxu0 0
        %760 = vmatprep.subr.bf16.mxu0 0
        %761 = vmatpush1.bf16.msra.mxu0 0
        %762 = vmatprep.subr.bf16.mxu0 0
        %763 = vmatpush1.bf16.msra.mxu0 0
        %764 = vmatprep.subr.bf16.mxu0 0
        %765 = vmatpush1.bf16.msra.mxu0 0
        %766 = vmatprep.subr.bf16.mxu0 0
        %767 = vmatpush1.bf16.msra.mxu0 0
        %768 = vmatprep.subr.bf16.mxu0 0
        %769 = vmatpush1.bf16.msra.mxu0 0
        %770 = vmatprep.subr.bf16.mxu0 0
        %771 = vmatpush1.bf16.msra.mxu0 0
        %772 = vmatprep.mubr.bf16.mxu0 0
        %773 = vmatmul.mubr.bf16.gmra.mrb[0].mxu0 %v738
        %v774 = vpop.f32.mrb[0].mxu0
        %v775 = vadd.f32 %v723, %v774
        %v776 = vpop.f32.mrb[0].mxu0
        %v777 = vpop.f32.mrb[0].mxu0
        %v778 = vpop.f32.mrb[0].mxu0
        %779 = vdwg.mxu0
        %s780 = smul.u32 %s37, 8
        %v781 = vlaneseq
        %v782 = vshrl.u32 %v781, 7
        %v783 = vstv %s780
        %v784 = vadd.s32 %v783, %v782
        %v785 = vlaneseq
        %v786 = vand.u32 %v785, 127
        %vm787 = vcmp.le.s32.totalorder %v786, %v784
        %v788 = vpack.c.bf16 %v708, %v708
        %v789 = vpack.c.bf16 %v775, %v775
        %vm790 = vcmask 64512
        %v792 = vsel %vm790, %v788, 0
        %v795 = vsel %vm790, %v789, 0
        %797 = vmatprep.subr.bf16.mxu0 0
        %798 = vmatpush1.bf16.xpose.msra.mxu0 %v795
        %799 = vmatprep.subr.bf16.mxu0 0
        %800 = vmatpush1.bf16.xpose.msra.mxu0 0
        %801 = vmatprep.subr.bf16.mxu0 0
        %802 = vmatpush1.bf16.xpose.msra.mxu0 0
        %803 = vmatprep.subr.bf16.mxu0 0
        %804 = vmatpush1.bf16.xpose.msra.mxu0 0
        %805 = vmatprep.subr.bf16.mxu0 0
        %806 = vmatpush1.bf16.xpose.msra.mxu0 0
        %807 = vmatprep.subr.bf16.mxu0 0
        %808 = vmatpush1.bf16.xpose.msra.mxu0 0
        %809 = vmatprep.subr.bf16.mxu0 0
        %810 = vmatpush1.bf16.xpose.msra.mxu0 0
        %811 = vmatprep.subr.bf16.mxu0 0
        %812 = vmatpush1.bf16.xpose.msra.mxu0 0
        %813 = vmatprep.subr.bf16.mxu0 0
        %814 = vmatpush1.bf16.xpose.msra.mxu0 0
        %815 = vmatprep.subr.bf16.mxu0 0
        %816 = vmatpush1.bf16.xpose.msra.mxu0 0
        %817 = vmatprep.subr.bf16.mxu0 0
        %818 = vmatpush1.bf16.xpose.msra.mxu0 0
        %819 = vmatprep.subr.bf16.mxu0 0
        %820 = vmatpush1.bf16.xpose.msra.mxu0 0
        %821 = vmatprep.subr.bf16.mxu0 0
        %822 = vmatpush1.bf16.xpose.msra.mxu0 0
        %823 = vmatprep.subr.bf16.mxu0 0
        %824 = vmatpush1.bf16.xpose.msra.mxu0 0
        %825 = vmatprep.subr.bf16.mxu0 0
        %826 = vmatpush1.bf16.xpose.msra.mxu0 0
        %827 = vmatprep.subr.bf16.mxu0 0
        %828 = vmatpush1.bf16.xpose.msra.mxu0 0
        %829 = vmatprep.mubr.bf16.mxu0 0
        %830 = vmatmul.mubr.bf16.gmra.mrb[0].mxu0 %v792
        %v831 = vpop.f32.mrb[0].mxu0
        %v832 = vadd.f32 0.0, %v831
        %v833 = vpop.f32.mrb[0].mxu0
        %v834 = vpop.f32.mrb[0].mxu0
        %v835 = vpop.f32.mrb[0].mxu0
        %836 = vdwg.mxu0
        %v837 = vmul.f32 %v832, 0.35355338
        %v838 = vsel %vm787, %v837, -inf
        %v839 = vsel %vm790, %v838, -inf
        %840 = vmax.xlane.f32.xlu0 %v839
        %v841 = vpop.xlane.xlu0 %840
        %v842 = vsub.f32 %v838, %v841
        %v843 = vmul.f32 %v842, 1.442695
        %v844 = vpow.pop %v843
        %v845 = vsel %vm790, %v844, 0.0
        %846 = vadd.xlane.f32.xlu0 %v845
        %v847 = vpop.xlane.xlu0 %846
        %v848 = vrcp.pop %v847
        %v849 = vmul.f32 %v844, %v848
        %v850 = vpack.c.bf16 %v849, %v849
        %852 = vrot.lane.b32.xlu0 %v789, 96
        %v853 = vpop.permute.xlu0 %852
        %v855 = vsel %vm790, %v850, 0
        %vm857 = vcmask 1043456
        %v859 = vsel %vm857, %v853, 0
        %861 = vmatprep.subr.bf16.mxu0 0
        %862 = vmatpush1.bf16.msra.mxu0 %v859
        %863 = vmatprep.subr.bf16.mxu0 0
        %864 = vmatpush1.bf16.msra.mxu0 0
        %865 = vmatprep.subr.bf16.mxu0 0
        %866 = vmatpush1.bf16.msra.mxu0 0
        %867 = vmatprep.subr.bf16.mxu0 0
        %868 = vmatpush1.bf16.msra.mxu0 0
        %869 = vmatprep.subr.bf16.mxu0 0
        %870 = vmatpush1.bf16.msra.mxu0 0
        %871 = vmatprep.subr.bf16.mxu0 0
        %872 = vmatpush1.bf16.msra.mxu0 0
        %873 = vmatprep.subr.bf16.mxu0 0
        %874 = vmatpush1.bf16.msra.mxu0 0
        %875 = vmatprep.subr.bf16.mxu0 0
        %876 = vmatpush1.bf16.msra.mxu0 0
        %877 = vmatprep.subr.bf16.mxu0 0
        %878 = vmatpush1.bf16.msra.mxu0 0
        %879 = vmatprep.subr.bf16.mxu0 0
        %880 = vmatpush1.bf16.msra.mxu0 0
        %881 = vmatprep.subr.bf16.mxu0 0
        %882 = vmatpush1.bf16.msra.mxu0 0
        %883 = vmatprep.subr.bf16.mxu0 0
        %884 = vmatpush1.bf16.msra.mxu0 0
        %885 = vmatprep.subr.bf16.mxu0 0
        %886 = vmatpush1.bf16.msra.mxu0 0
        %887 = vmatprep.subr.bf16.mxu0 0
        %888 = vmatpush1.bf16.msra.mxu0 0
        %889 = vmatprep.subr.bf16.mxu0 0
        %890 = vmatpush1.bf16.msra.mxu0 0
        %891 = vmatprep.subr.bf16.mxu0 0
        %892 = vmatpush1.bf16.msra.mxu0 0
        %893 = vmatprep.mubr.bf16.mxu0 0
        %894 = vmatmul.mubr.bf16.gmra.mrb[0].mxu0 %v855
        %v895 = vpop.f32.mrb[0].mxu0
        %v896 = vadd.f32 0.0, %v895
        %v897 = vpop.f32.mrb[0].mxu0
        %v898 = vpop.f32.mrb[0].mxu0
        %v899 = vpop.f32.mrb[0].mxu0
        %900 = vdwg.mxu0
        %v901 = vpack.c.bf16 %v896, %v896
        %v902 = vld [vmem:[%s8] sm:$0xf]
        %904 = vrot.lane.b32.xlu0 %v788, 120
        %v905 = vpop.permute.xlu0 %904
        %906 = vrot.lane.b32.xlu0 %v789, 120
        %v907 = vpop.permute.xlu0 %906
        %v909 = vsel %vm790, %v905, 0
        %v912 = vsel %vm790, %v907, 0
        %914 = vmatprep.subr.bf16.mxu0 0
        %915 = vmatpush1.bf16.xpose.msra.mxu0 %v912
        %916 = vmatprep.subr.bf16.mxu0 0
        %917 = vmatpush1.bf16.xpose.msra.mxu0 0
        %918 = vmatprep.subr.bf16.mxu0 0
        %919 = vmatpush1.bf16.xpose.msra.mxu0 0
        %920 = vmatprep.subr.bf16.mxu0 0
        %921 = vmatpush1.bf16.xpose.msra.mxu0 0
        %922 = vmatprep.subr.bf16.mxu0 0
        %923 = vmatpush1.bf16.xpose.msra.mxu0 0
        %924 = vmatprep.subr.bf16.mxu0 0
        %925 = vmatpush1.bf16.xpose.msra.mxu0 0
        %926 = vmatprep.subr.bf16.mxu0 0
        %927 = vmatpush1.bf16.xpose.msra.mxu0 0
        %928 = vmatprep.subr.bf16.mxu0 0
        %929 = vmatpush1.bf16.xpose.msra.mxu0 0
        %930 = vmatprep.subr.bf16.mxu0 0
        %931 = vmatpush1.bf16.xpose.msra.mxu0 0
        %932 = vmatprep.subr.bf16.mxu0 0
        %933 = vmatpush1.bf16.xpose.msra.mxu0 0
        %934 = vmatprep.subr.bf16.mxu0 0
        %935 = vmatpush1.bf16.xpose.msra.mxu0 0
        %936 = vmatprep.subr.bf16.mxu0 0
        %937 = vmatpush1.bf16.xpose.msra.mxu0 0
        %938 = vmatprep.subr.bf16.mxu0 0
        %939 = vmatpush1.bf16.xpose.msra.mxu0 0
        %940 = vmatprep.subr.bf16.mxu0 0
        %941 = vmatpush1.bf16.xpose.msra.mxu0 0
        %942 = vmatprep.subr.bf16.mxu0 0
        %943 = vmatpush1.bf16.xpose.msra.mxu0 0
        %944 = vmatprep.subr.bf16.mxu0 0
        %945 = vmatpush1.bf16.xpose.msra.mxu0 0
        %946 = vmatprep.mubr.bf16.mxu0 0
        %947 = vmatmul.mubr.bf16.gmra.mrb[0].mxu0 %v909
        %v948 = vpop.f32.mrb[0].mxu0
        %v949 = vadd.f32 0.0, %v948
        %v950 = vpop.f32.mrb[0].mxu0
        %v951 = vpop.f32.mrb[0].mxu0
        %v952 = vpop.f32.mrb[0].mxu0
        %953 = vdwg.mxu0
        %v954 = vmul.f32 %v949, 0.35355338
        %v955 = vsel %vm787, %v954, -inf
        %v956 = vsel %vm790, %v955, -inf
        %957 = vmax.xlane.f32.xlu0 %v956
        %v958 = vpop.xlane.xlu0 %957
        %v959 = vsub.f32 %v955, %v958
        %v960 = vmul.f32 %v959, 1.442695
        %v961 = vpow.pop %v960
        %v962 = vsel %vm790, %v961, 0.0
        %963 = vadd.xlane.f32.xlu0 %v962
        %v964 = vpop.xlane.xlu0 %963
        %v965 = vrcp.pop %v964
        %v966 = vmul.f32 %v961, %v965
        %v967 = vpack.c.bf16 %v966, %v966
        %968 = vrot.lane.b32.xlu0 %v789, 88
        %v969 = vpop.permute.xlu0 %968
        %v971 = vsel %vm790, %v967, 0
        %v974 = vsel %vm857, %v969, 0
        %976 = vmatprep.subr.bf16.mxu0 0
        %977 = vmatpush1.bf16.msra.mxu0 %v974
        %978 = vmatprep.subr.bf16.mxu0 0
        %979 = vmatpush1.bf16.msra.mxu0 0
        %980 = vmatprep.subr.bf16.mxu0 0
        %981 = vmatpush1.bf16.msra.mxu0 0
        %982 = vmatprep.subr.bf16.mxu0 0
        %983 = vmatpush1.bf16.msra.mxu0 0
        %984 = vmatprep.subr.bf16.mxu0 0
        %985 = vmatpush1.bf16.msra.mxu0 0
        %986 = vmatprep.subr.bf16.mxu0 0
        %987 = vmatpush1.bf16.msra.mxu0 0
        %988 = vmatprep.subr.bf16.mxu0 0
        %989 = vmatpush1.bf16.msra.mxu0 0
        %990 = vmatprep.subr.bf16.mxu0 0
        %991 = vmatpush1.bf16.msra.mxu0 0
        %992 = vmatprep.subr.bf16.mxu0 0
        %993 = vmatpush1.bf16.msra.mxu0 0
        %994 = vmatprep.subr.bf16.mxu0 0
        %995 = vmatpush1.bf16.msra.mxu0 0
        %996 = vmatprep.subr.bf16.mxu0 0
        %997 = vmatpush1.bf16.msra.mxu0 0
        %998 = vmatprep.subr.bf16.mxu0 0
        %999 = vmatpush1.bf16.msra.mxu0 0
        %1000 = vmatprep.subr.bf16.mxu0 0
        %1001 = vmatpush1.bf16.msra.mxu0 0
        %1002 = vmatprep.subr.bf16.mxu0 0
        %1003 = vmatpush1.bf16.msra.mxu0 0
        %1004 = vmatprep.subr.bf16.mxu0 0
        %1005 = vmatpush1.bf16.msra.mxu0 0
        %1006 = vmatprep.subr.bf16.mxu0 0
        %1007 = vmatpush1.bf16.msra.mxu0 0
        %1008 = vmatprep.mubr.bf16.mxu0 0
        %1009 = vmatmul.mubr.bf16.gmra.mrb[0].mxu0 %v971
        %v1010 = vpop.f32.mrb[0].mxu0
        %v1011 = vadd.f32 0.0, %v1010
        %v1012 = vpop.f32.mrb[0].mxu0
        %v1013 = vpop.f32.mrb[0].mxu0
        %v1014 = vpop.f32.mrb[0].mxu0
        %1015 = vdwg.mxu0
        %v1016 = vpack.c.bf16 %v1011, %v1011
        %s1017 = scalar_lea.vmem %s8, 4
        %v1018 = vld [vmem:[%s1017] sm:$0xf]
        %v1020 = vsel %vm790, %v1016, 0
        %v1023 = vsel %vm857, %v1018, 0
        %1025 = vmatprep.subr.bf16.mxu0 0
        %1026 = vmatpush1.bf16.msra.mxu0 %v1023
        %1027 = vmatprep.subr.bf16.mxu0 0
        %1028 = vmatpush1.bf16.msra.mxu0 0
        %1029 = vmatprep.subr.bf16.mxu0 0
        %1030 = vmatpush1.bf16.msra.mxu0 0
        %1031 = vmatprep.subr.bf16.mxu0 0
        %1032 = vmatpush1.bf16.msra.mxu0 0
        %1033 = vmatprep.subr.bf16.mxu0 0
        %1034 = vmatpush1.bf16.msra.mxu0 0
        %1035 = vmatprep.subr.bf16.mxu0 0
        %1036 = vmatpush1.bf16.msra.mxu0 0
        %1037 = vmatprep.subr.bf16.mxu0 0
        %1038 = vmatpush1.bf16.msra.mxu0 0
        %1039 = vmatprep.subr.bf16.mxu0 0
        %1040 = vmatpush1.bf16.msra.mxu0 0
        %1041 = vmatprep.subr.bf16.mxu0 0
        %1042 = vmatpush1.bf16.msra.mxu0 0
        %1043 = vmatprep.subr.bf16.mxu0 0
        %1044 = vmatpush1.bf16.msra.mxu0 0
        %1045 = vmatprep.subr.bf16.mxu0 0
        %1046 = vmatpush1.bf16.msra.mxu0 0
        %1047 = vmatprep.subr.bf16.mxu0 0
        %1048 = vmatpush1.bf16.msra.mxu0 0
        %1049 = vmatprep.subr.bf16.mxu0 0
        %1050 = vmatpush1.bf16.msra.mxu0 0
        %1051 = vmatprep.subr.bf16.mxu0 0
        %1052 = vmatpush1.bf16.msra.mxu0 0
        %1053 = vmatprep.subr.bf16.mxu0 0
        %1054 = vmatpush1.bf16.msra.mxu0 0
        %1055 = vmatprep.subr.bf16.mxu0 0
        %1056 = vmatpush1.bf16.msra.mxu0 0
        %1057 = vmatprep.mubr.bf16.mxu0 0
        %1058 = vmatmul.mubr.bf16.gmra.mrb[0].mxu0 %v1020
        %v1059 = vpop.f32.mrb[0].mxu0
        %v1060 = vadd.f32 0.0, %v1059
        %v1061 = vpop.f32.mrb[0].mxu0
        %v1062 = vpop.f32.mrb[0].mxu0
        %v1063 = vpop.f32.mrb[0].mxu0
        %1064 = vdwg.mxu0
        %v1066 = vsel %vm790, %v901, 0
        %v1069 = vsel %vm857, %v902, 0
        %1071 = vmatprep.subr.bf16.mxu0 0
        %1072 = vmatpush1.bf16.msra.mxu0 %v1069
        %1073 = vmatprep.subr.bf16.mxu0 0
        %1074 = vmatpush1.bf16.msra.mxu0 0
        %1075 = vmatprep.subr.bf16.mxu0 0
        %1076 = vmatpush1.bf16.msra.mxu0 0
        %1077 = vmatprep.subr.bf16.mxu0 0
        %1078 = vmatpush1.bf16.msra.mxu0 0
        %1079 = vmatprep.subr.bf16.mxu0 0
        %1080 = vmatpush1.bf16.msra.mxu0 0
        %1081 = vmatprep.subr.bf16.mxu0 0
        %1082 = vmatpush1.bf16.msra.mxu0 0
        %1083 = vmatprep.subr.bf16.mxu0 0
        %1084 = vmatpush1.bf16.msra.mxu0 0
        %1085 = vmatprep.subr.bf16.mxu0 0
        %1086 = vmatpush1.bf16.msra.mxu0 0
        %1087 = vmatprep.subr.bf16.mxu0 0
        %1088 = vmatpush1.bf16.msra.mxu0 0
        %1089 = vmatprep.subr.bf16.mxu0 0
        %1090 = vmatpush1.bf16.msra.mxu0 0
        %1091 = vmatprep.subr.bf16.mxu0 0
        %1092 = vmatpush1.bf16.msra.mxu0 0
        %1093 = vmatprep.subr.bf16.mxu0 0
        %1094 = vmatpush1.bf16.msra.mxu0 0
        %1095 = vmatprep.subr.bf16.mxu0 0
        %1096 = vmatpush1.bf16.msra.mxu0 0
        %1097 = vmatprep.subr.bf16.mxu0 0
        %1098 = vmatpush1.bf16.msra.mxu0 0
        %1099 = vmatprep.subr.bf16.mxu0 0
        %1100 = vmatpush1.bf16.msra.mxu0 0
        %1101 = vmatprep.subr.bf16.mxu0 0
        %1102 = vmatpush1.bf16.msra.mxu0 0
        %1103 = vmatprep.mubr.bf16.mxu0 0
        %1104 = vmatmul.mubr.bf16.gmra.mrb[0].mxu0 %v1066
        %v1105 = vpop.f32.mrb[0].mxu0
        %v1106 = vadd.f32 %v1060, %v1105
        %v1107 = vpop.f32.mrb[0].mxu0
        %v1108 = vpop.f32.mrb[0].mxu0
        %v1109 = vpop.f32.mrb[0].mxu0
        %1110 = vdwg.mxu0
        %1111 = vrot.lane.b32.xlu0 %v788, 112
        %v1112 = vpop.permute.xlu0 %1111
        %1113 = vrot.lane.b32.xlu0 %v789, 112
        %v1114 = vpop.permute.xlu0 %1113
        %v1116 = vsel %vm790, %v1112, 0
        %v1119 = vsel %vm790, %v1114, 0
        %1121 = vmatprep.subr.bf16.mxu0 0
        %1122 = vmatpush1.bf16.xpose.msra.mxu0 %v1119
        %1123 = vmatprep.subr.bf16.mxu0 0
        %1124 = vmatpush1.bf16.xpose.msra.mxu0 0
        %1125 = vmatprep.subr.bf16.mxu0 0
        %1126 = vmatpush1.bf16.xpose.msra.mxu0 0
        %1127 = vmatprep.subr.bf16.mxu0 0
        %1128 = vmatpush1.bf16.xpose.msra.mxu0 0
        %1129 = vmatprep.subr.bf16.mxu0 0
        %1130 = vmatpush1.bf16.xpose.msra.mxu0 0
        %1131 = vmatprep.subr.bf16.mxu0 0
        %1132 = vmatpush1.bf16.xpose.msra.mxu0 0
        %1133 = vmatprep.subr.bf16.mxu0 0
        %1134 = vmatpush1.bf16.xpose.msra.mxu0 0
        %1135 = vmatprep.subr.bf16.mxu0 0
        %1136 = vmatpush1.bf16.xpose.msra.mxu0 0
        %1137 = vmatprep.subr.bf16.mxu0 0
        %1138 = vmatpush1.bf16.xpose.msra.mxu0 0
        %1139 = vmatprep.subr.bf16.mxu0 0
        %1140 = vmatpush1.bf16.xpose.msra.mxu0 0
        %1141 = vmatprep.subr.bf16.mxu0 0
        %1142 = vmatpush1.bf16.xpose.msra.mxu0 0
        %1143 = vmatprep.subr.bf16.mxu0 0
        %1144 = vmatpush1.bf16.xpose.msra.mxu0 0
        %1145 = vmatprep.subr.bf16.mxu0 0
        %1146 = vmatpush1.bf16.xpose.msra.mxu0 0
        %1147 = vmatprep.subr.bf16.mxu0 0
        %1148 = vmatpush1.bf16.xpose.msra.mxu0 0
        %1149 = vmatprep.subr.bf16.mxu0 0
        %1150 = vmatpush1.bf16.xpose.msra.mxu0 0
        %1151 = vmatprep.subr.bf16.mxu0 0
        %1152 = vmatpush1.bf16.xpose.msra.mxu0 0
        %1153 = vmatprep.mubr.bf16.mxu0 0
        %1154 = vmatmul.mubr.bf16.gmra.mrb[0].mxu0 %v1116
        %v1155 = vpop.f32.mrb[0].mxu0
        %v1156 = vadd.f32 0.0, %v1155
        %v1157 = vpop.f32.mrb[0].mxu0
        %v1158 = vpop.f32.mrb[0].mxu0
        %v1159 = vpop.f32.mrb[0].mxu0
        %1160 = vdwg.mxu0
        %v1161 = vmul.f32 %v1156, 0.35355338
        %v1162 = vsel %vm787, %v1161, -inf
        %v1163 = vsel %vm790, %v1162, -inf
        %1164 = vmax.xlane.f32.xlu0 %v1163
        %v1165 = vpop.xlane.xlu0 %1164
        %v1166 = vsub.f32 %v1162, %v1165
        %v1167 = vmul.f32 %v1166, 1.442695
        %v1168 = vpow.pop %v1167
        %v1169 = vsel %vm790, %v1168, 0.0
        %1170 = vadd.xlane.f32.xlu0 %v1169
        %v1171 = vpop.xlane.xlu0 %1170
        %v1172 = vrcp.pop %v1171
        %v1173 = vmul.f32 %v1168, %v1172
        %v1174 = vpack.c.bf16 %v1173, %v1173
        %1175 = vrot.lane.b32.xlu0 %v789, 80
        %v1176 = vpop.permute.xlu0 %1175
        %v1178 = vsel %vm790, %v1174, 0
        %v1181 = vsel %vm857, %v1176, 0
        %1183 = vmatprep.subr.bf16.mxu0 0
        %1184 = vmatpush1.bf16.msra.mxu0 %v1181
        %1185 = vmatprep.subr.bf16.mxu0 0
        %1186 = vmatpush1.bf16.msra.mxu0 0
        %1187 = vmatprep.subr.bf16.mxu0 0
        %1188 = vmatpush1.bf16.msra.mxu0 0
        %1189 = vmatprep.subr.bf16.mxu0 0
        %1190 = vmatpush1.bf16.msra.mxu0 0
        %1191 = vmatprep.subr.bf16.mxu0 0
        %1192 = vmatpush1.bf16.msra.mxu0 0
        %1193 = vmatprep.subr.bf16.mxu0 0
        %1194 = vmatpush1.bf16.msra.mxu0 0
        %1195 = vmatprep.subr.bf16.mxu0 0
        %1196 = vmatpush1.bf16.msra.mxu0 0
        %1197 = vmatprep.subr.bf16.mxu0 0
        %1198 = vmatpush1.bf16.msra.mxu0 0
        %1199 = vmatprep.subr.bf16.mxu0 0
        %1200 = vmatpush1.bf16.msra.mxu0 0
        %1201 = vmatprep.subr.bf16.mxu0 0
        %1202 = vmatpush1.bf16.msra.mxu0 0
        %1203 = vmatprep.subr.bf16.mxu0 0
        %1204 = vmatpush1.bf16.msra.mxu0 0
        %1205 = vmatprep.subr.bf16.mxu0 0
        %1206 = vmatpush1.bf16.msra.mxu0 0
        %1207 = vmatprep.subr.bf16.mxu0 0
        %1208 = vmatpush1.bf16.msra.mxu0 0
        %1209 = vmatprep.subr.bf16.mxu0 0
        %1210 = vmatpush1.bf16.msra.mxu0 0
        %1211 = vmatprep.subr.bf16.mxu0 0
        %1212 = vmatpush1.bf16.msra.mxu0 0
        %1213 = vmatprep.subr.bf16.mxu0 0
        %1214 = vmatpush1.bf16.msra.mxu0 0
        %1215 = vmatprep.mubr.bf16.mxu0 0
        %1216 = vmatmul.mubr.bf16.gmra.mrb[0].mxu0 %v1178
        %v1217 = vpop.f32.mrb[0].mxu0
        %v1218 = vadd.f32 0.0, %v1217
        %v1219 = vpop.f32.mrb[0].mxu0
        %v1220 = vpop.f32.mrb[0].mxu0
        %v1221 = vpop.f32.mrb[0].mxu0
        %1222 = vdwg.mxu0
        %v1223 = vpack.c.bf16 %v1218, %v1218
        %s1224 = scalar_lea.vmem %s8, 8
        %v1225 = vld [vmem:[%s1224] sm:$0xf]
        %v1227 = vsel %vm790, %v1223, 0
        %v1230 = vsel %vm857, %v1225, 0
        %1232 = vmatprep.subr.bf16.mxu0 0
        %1233 = vmatpush1.bf16.msra.mxu0 %v1230
        %1234 = vmatprep.subr.bf16.mxu0 0
        %1235 = vmatpush1.bf16.msra.mxu0 0
        %1236 = vmatprep.subr.bf16.mxu0 0
        %1237 = vmatpush1.bf16.msra.mxu0 0
        %1238 = vmatprep.subr.bf16.mxu0 0
        %1239 = vmatpush1.bf16.msra.mxu0 0
        %1240 = vmatprep.subr.bf16.mxu0 0
        %1241 = vmatpush1.bf16.msra.mxu0 0
        %1242 = vmatprep.subr.bf16.mxu0 0
        %1243 = vmatpush1.bf16.msra.mxu0 0
        %1244 = vmatprep.subr.bf16.mxu0 0
        %1245 = vmatpush1.bf16.msra.mxu0 0
        %1246 = vmatprep.subr.bf16.mxu0 0
        %1247 = vmatpush1.bf16.msra.mxu0 0
        %1248 = vmatprep.subr.bf16.mxu0 0
        %1249 = vmatpush1.bf16.msra.mxu0 0
        %1250 = vmatprep.subr.bf16.mxu0 0
        %1251 = vmatpush1.bf16.msra.mxu0 0
        %1252 = vmatprep.subr.bf16.mxu0 0
        %1253 = vmatpush1.bf16.msra.mxu0 0
        %1254 = vmatprep.subr.bf16.mxu0 0
        %1255 = vmatpush1.bf16.msra.mxu0 0
        %1256 = vmatprep.subr.bf16.mxu0 0
        %1257 = vmatpush1.bf16.msra.mxu0 0
        %1258 = vmatprep.subr.bf16.mxu0 0
        %1259 = vmatpush1.bf16.msra.mxu0 0
        %1260 = vmatprep.subr.bf16.mxu0 0
        %1261 = vmatpush1.bf16.msra.mxu0 0
        %1262 = vmatprep.subr.bf16.mxu0 0
        %1263 = vmatpush1.bf16.msra.mxu0 0
        %1264 = vmatprep.mubr.bf16.mxu0 0
        %1265 = vmatmul.mubr.bf16.gmra.mrb[0].mxu0 %v1227
        %v1266 = vpop.f32.mrb[0].mxu0
        %v1267 = vadd.f32 0.0, %v1266
        %v1268 = vpop.f32.mrb[0].mxu0
        %v1269 = vpop.f32.mrb[0].mxu0
        %v1270 = vpop.f32.mrb[0].mxu0
        %1271 = vdwg.mxu0
        %v1272 = vadd.f32 %v1106, %v1267
        %1273 = vrot.lane.b32.xlu0 %v788, 104
        %v1274 = vpop.permute.xlu0 %1273
        %1275 = vrot.lane.b32.xlu0 %v789, 104
        %v1276 = vpop.permute.xlu0 %1275
        %v1278 = vsel %vm790, %v1274, 0
        %v1281 = vsel %vm790, %v1276, 0
        %1283 = vmatprep.subr.bf16.mxu0 0
        %1284 = vmatpush1.bf16.xpose.msra.mxu0 %v1281
        %1285 = vmatprep.subr.bf16.mxu0 0
        %1286 = vmatpush1.bf16.xpose.msra.mxu0 0
        %1287 = vmatprep.subr.bf16.mxu0 0
        %1288 = vmatpush1.bf16.xpose.msra.mxu0 0
        %1289 = vmatprep.subr.bf16.mxu0 0
        %1290 = vmatpush1.bf16.xpose.msra.mxu0 0
        %1291 = vmatprep.subr.bf16.mxu0 0
        %1292 = vmatpush1.bf16.xpose.msra.mxu0 0
        %1293 = vmatprep.subr.bf16.mxu0 0
        %1294 = vmatpush1.bf16.xpose.msra.mxu0 0
        %1295 = vmatprep.subr.bf16.mxu0 0
        %1296 = vmatpush1.bf16.xpose.msra.mxu0 0
        %1297 = vmatprep.subr.bf16.mxu0 0
        %1298 = vmatpush1.bf16.xpose.msra.mxu0 0
        %1299 = vmatprep.subr.bf16.mxu0 0
        %1300 = vmatpush1.bf16.xpose.msra.mxu0 0
        %1301 = vmatprep.subr.bf16.mxu0 0
        %1302 = vmatpush1.bf16.xpose.msra.mxu0 0
        %1303 = vmatprep.subr.bf16.mxu0 0
        %1304 = vmatpush1.bf16.xpose.msra.mxu0 0
        %1305 = vmatprep.subr.bf16.mxu0 0
        %1306 = vmatpush1.bf16.xpose.msra.mxu0 0
        %1307 = vmatprep.subr.bf16.mxu0 0
        %1308 = vmatpush1.bf16.xpose.msra.mxu0 0
        %1309 = vmatprep.subr.bf16.mxu0 0
        %1310 = vmatpush1.bf16.xpose.msra.mxu0 0
        %1311 = vmatprep.subr.bf16.mxu0 0
        %1312 = vmatpush1.bf16.xpose.msra.mxu0 0
        %1313 = vmatprep.subr.bf16.mxu0 0
        %1314 = vmatpush1.bf16.xpose.msra.mxu0 0
        %1315 = vmatprep.mubr.bf16.mxu0 0
        %1316 = vmatmul.mubr.bf16.gmra.mrb[0].mxu0 %v1278
        %v1317 = vpop.f32.mrb[0].mxu0
        %v1318 = vadd.f32 0.0, %v1317
        %v1319 = vpop.f32.mrb[0].mxu0
        %v1320 = vpop.f32.mrb[0].mxu0
        %v1321 = vpop.f32.mrb[0].mxu0
        %1322 = vdwg.mxu0
        %v1323 = vmul.f32 %v1318, 0.35355338
        %v1324 = vsel %vm787, %v1323, -inf
        %v1325 = vsel %vm790, %v1324, -inf
        %1326 = vmax.xlane.f32.xlu0 %v1325
        %v1327 = vpop.xlane.xlu0 %1326
        %v1328 = vsub.f32 %v1324, %v1327
        %v1329 = vmul.f32 %v1328, 1.442695
        %v1330 = vpow.pop %v1329
        %v1331 = vsel %vm790, %v1330, 0.0
        %1332 = vadd.xlane.f32.xlu0 %v1331
        %v1333 = vpop.xlane.xlu0 %1332
        %v1334 = vrcp.pop %v1333
        %v1335 = vmul.f32 %v1330, %v1334
        %v1336 = vpack.c.bf16 %v1335, %v1335
        %1337 = vrot.lane.b32.xlu0 %v789, 72
        %v1338 = vpop.permute.xlu0 %1337
        %v1340 = vsel %vm790, %v1336, 0
        %v1343 = vsel %vm857, %v1338, 0
        %1345 = vmatprep.subr.bf16.mxu0 0
        %1346 = vmatpush1.bf16.msra.mxu0 %v1343
        %1347 = vmatprep.subr.bf16.mxu0 0
        %1348 = vmatpush1.bf16.msra.mxu0 0
        %1349 = vmatprep.subr.bf16.mxu0 0
        %1350 = vmatpush1.bf16.msra.mxu0 0
        %1351 = vmatprep.subr.bf16.mxu0 0
        %1352 = vmatpush1.bf16.msra.mxu0 0
        %1353 = vmatprep.subr.bf16.mxu0 0
        %1354 = vmatpush1.bf16.msra.mxu0 0
        %1355 = vmatprep.subr.bf16.mxu0 0
        %1356 = vmatpush1.bf16.msra.mxu0 0
        %1357 = vmatprep.subr.bf16.mxu0 0
        %1358 = vmatpush1.bf16.msra.mxu0 0
        %1359 = vmatprep.subr.bf16.mxu0 0
        %1360 = vmatpush1.bf16.msra.mxu0 0
        %1361 = vmatprep.subr.bf16.mxu0 0
        %1362 = vmatpush1.bf16.msra.mxu0 0
        %1363 = vmatprep.subr.bf16.mxu0 0
        %1364 = vmatpush1.bf16.msra.mxu0 0
        %1365 = vmatprep.subr.bf16.mxu0 0
        %1366 = vmatpush1.bf16.msra.mxu0 0
        %1367 = vmatprep.subr.bf16.mxu0 0
        %1368 = vmatpush1.bf16.msra.mxu0 0
        %1369 = vmatprep.subr.bf16.mxu0 0
        %1370 = vmatpush1.bf16.msra.mxu0 0
        %1371 = vmatprep.subr.bf16.mxu0 0
        %1372 = vmatpush1.bf16.msra.mxu0 0
        %1373 = vmatprep.subr.bf16.mxu0 0
        %1374 = vmatpush1.bf16.msra.mxu0 0
        %1375 = vmatprep.subr.bf16.mxu0 0
        %1376 = vmatpush1.bf16.msra.mxu0 0
        %1377 = vmatprep.mubr.bf16.mxu0 0
        %1378 = vmatmul.mubr.bf16.gmra.mrb[0].mxu0 %v1340
        %v1379 = vpop.f32.mrb[0].mxu0
        %v1380 = vadd.f32 0.0, %v1379
        %v1381 = vpop.f32.mrb[0].mxu0
        %v1382 = vpop.f32.mrb[0].mxu0
        %v1383 = vpop.f32.mrb[0].mxu0
        %1384 = vdwg.mxu0
        %v1385 = vpack.c.bf16 %v1380, %v1380
        %s1386 = scalar_lea.vmem %s8, 12
        %v1387 = vld [vmem:[%s1386] sm:$0xf]
        %v1389 = vsel %vm790, %v1385, 0
        %v1392 = vsel %vm857, %v1387, 0
        %1394 = vmatprep.subr.bf16.mxu0 0
        %1395 = vmatpush1.bf16.msra.mxu0 %v1392
        %1396 = vmatprep.subr.bf16.mxu0 0
        %1397 = vmatpush1.bf16.msra.mxu0 0
        %1398 = vmatprep.subr.bf16.mxu0 0
        %1399 = vmatpush1.bf16.msra.mxu0 0
        %1400 = vmatprep.subr.bf16.mxu0 0
        %1401 = vmatpush1.bf16.msra.mxu0 0
        %1402 = vmatprep.subr.bf16.mxu0 0
        %1403 = vmatpush1.bf16.msra.mxu0 0
        %1404 = vmatprep.subr.bf16.mxu0 0
        %1405 = vmatpush1.bf16.msra.mxu0 0
        %1406 = vmatprep.subr.bf16.mxu0 0
        %1407 = vmatpush1.bf16.msra.mxu0 0
        %1408 = vmatprep.subr.bf16.mxu0 0
        %1409 = vmatpush1.bf16.msra.mxu0 0
        %1410 = vmatprep.subr.bf16.mxu0 0
        %1411 = vmatpush1.bf16.msra.mxu0 0
        %1412 = vmatprep.subr.bf16.mxu0 0
        %1413 = vmatpush1.bf16.msra.mxu0 0
        %1414 = vmatprep.subr.bf16.mxu0 0
        %1415 = vmatpush1.bf16.msra.mxu0 0
        %1416 = vmatprep.subr.bf16.mxu0 0
        %1417 = vmatpush1.bf16.msra.mxu0 0
        %1418 = vmatprep.subr.bf16.mxu0 0
        %1419 = vmatpush1.bf16.msra.mxu0 0
        %1420 = vmatprep.subr.bf16.mxu0 0
        %1421 = vmatpush1.bf16.msra.mxu0 0
        %1422 = vmatprep.subr.bf16.mxu0 0
        %1423 = vmatpush1.bf16.msra.mxu0 0
        %1424 = vmatprep.subr.bf16.mxu0 0
        %1425 = vmatpush1.bf16.msra.mxu0 0
        %1426 = vmatprep.mubr.bf16.mxu0 0
        %1427 = vmatmul.mubr.bf16.gmra.mrb[0].mxu0 %v1389
        %v1428 = vpop.f32.mrb[0].mxu0
        %v1429 = vadd.f32 0.0, %v1428
        %v1430 = vpop.f32.mrb[0].mxu0
        %v1431 = vpop.f32.mrb[0].mxu0
        %v1432 = vpop.f32.mrb[0].mxu0
        %1433 = vdwg.mxu0
        %v1434 = vadd.f32 %v1272, %v1429
        %v1435 = vadd.f32 %v598, %v1434
        %v1436 = vld [vmem:[#allocation7] sm:$0x1]
        %v1438 = vlaneseq
        %v1439 = vshrl.u32 %v1438, 7
        %v1440 = vsub.s32 0, %v1439
        %v1441 = vrot.slane %v1436, %v1440
        %v1443 = vadd.f32 %v1435, %v1441
        %v1444 = vld [vmem:[%s10] sm:$0x1]
        %v1445 = vld [vmem:[%s11] sm:$0x1]
        %v1446 = vsel %vm602, %v1443, 0.0
        %1447 = vadd.xlane.f32.xlu0 %v1446
        %v1448 = vpop.xlane.xlu0 %1447
        %v1449 = vmul.f32 %v1448, %v606
        %v1450 = vsub.f32 %v1443, %v1449
        %v1451 = vmul.f32 %v1450, %v1450
        %v1452 = vsel %vm602, %v1451, 0.0
        %1453 = vadd.xlane.f32.xlu0 %v1452
        %v1454 = vpop.xlane.xlu0 %1453
        %v1455 = vmul.f32 %v1454, %v606
        %v1456 = vadd.f32 %v1455, 1e-05
        %v1457 = vrsqrt.pop %v1456
        %v1458 = vmul.f32 %v1450, %v1457
        %v1460 = vlaneseq
        %v1461 = vshrl.u32 %v1460, 7
        %v1462 = vsub.s32 0, %v1461
        %v1463 = vrot.slane %v1444, %v1462
        %v1465 = vmul.f32 %v1458, %v1463
        %v1467 = vlaneseq
        %v1468 = vshrl.u32 %v1467, 7
        %v1469 = vsub.s32 0, %v1468
        %v1470 = vrot.slane %v1445, %v1469
        %v1472 = vadd.f32 %v1465, %v1470
        %v1473 = vpack.c.bf16 %v1472, %v1472
        %v1474 = vld [vmem:[%s12] sm:$0xf]
        %v1475 = vld [vmem:[%s12 + $0x4] sm:$0xf]
        %v1476 = vld [vmem:[%s12 + $0x8] sm:$0xf]
        %v1477 = vld [vmem:[%s12 + $0xc] sm:$0xf]
        %v1478 = vld [vmem:[%s13] sm:$0x1]
        %v1480 = vlaneseq
        %v1481 = vshrl.u32 %v1480, 7
        %v1482 = vsub.s32 0, %v1481
        %v1483 = vrot.slane %v1478, %v1482
        %v1489 = vunpack.c.l.b16 %v1474
        %v1490 = vunpack.c.l.b16 %v1475
        %v1491 = vunpack.c.l.b16 %v1476
        %v1492 = vunpack.c.l.b16 %v1477
        %v1493 = vpack.c.b16 %v1490, %v1489
        %v1494 = vpack.c.b16 %v1492, %v1491
        %v1498 = vsel %vm602, %v1473, 0
        %1500 = vmatprep.subr.bf16.mxu0 0
        %1501 = vmatpush1.bf16.msra.mxu0 %v1493
        %1502 = vmatprep.subr.bf16.mxu0 0
        %1503 = vmatpush1.bf16.msra.mxu0 %v1494
        %1504 = vmatprep.subr.bf16.mxu0 0
        %1505 = vmatpush1.bf16.msra.mxu0 0
        %1506 = vmatprep.subr.bf16.mxu0 0
        %1507 = vmatpush1.bf16.msra.mxu0 0
        %1508 = vmatprep.subr.bf16.mxu0 0
        %1509 = vmatpush1.bf16.msra.mxu0 0
        %1510 = vmatprep.subr.bf16.mxu0 0
        %1511 = vmatpush1.bf16.msra.mxu0 0
        %1512 = vmatprep.subr.bf16.mxu0 0
        %1513 = vmatpush1.bf16.msra.mxu0 0
        %1514 = vmatprep.subr.bf16.mxu0 0
        %1515 = vmatpush1.bf16.msra.mxu0 0
        %1516 = vmatprep.subr.bf16.mxu0 0
        %1517 = vmatpush1.bf16.msra.mxu0 0
        %1518 = vmatprep.subr.bf16.mxu0 0
        %1519 = vmatpush1.bf16.msra.mxu0 0
        %1520 = vmatprep.subr.bf16.mxu0 0
        %1521 = vmatpush1.bf16.msra.mxu0 0
        %1522 = vmatprep.subr.bf16.mxu0 0
        %1523 = vmatpush1.bf16.msra.mxu0 0
        %1524 = vmatprep.subr.bf16.mxu0 0
        %1525 = vmatpush1.bf16.msra.mxu0 0
        %1526 = vmatprep.subr.bf16.mxu0 0
        %1527 = vmatpush1.bf16.msra.mxu0 0
        %1528 = vmatprep.subr.bf16.mxu0 0
        %1529 = vmatpush1.bf16.msra.mxu0 0
        %1530 = vmatprep.subr.bf16.mxu0 0
        %1531 = vmatpush1.bf16.msra.mxu0 0
        %1532 = vmatprep.mubr.bf16.mxu0 0
        %1533 = vmatmul.mubr.bf16.gmra.mrb[0].mxu0 %v1498
        %v1534 = vpop.f32.mrb[0].mxu0
        %v1535 = vadd.f32 %v1483, %v1534
        %v1536 = vpop.f32.mrb[0].mxu0
        %v1537 = vpop.f32.mrb[0].mxu0
        %v1538 = vpop.f32.mrb[0].mxu0
        %1539 = vdwg.mxu0
        %v1540 = vmul.f32 %v1535, 0.5
        %v1541 = vmul.f32 %v1535, %v1535
        %v1542 = vmul.f32 %v1535, %v1541
        %v1543 = vmul.f32 %v1542, 0.044715
        %v1544 = vadd.f32 %v1535, %v1543
        %v1545 = vmul.f32 %v1544, 0.7978846
        %v1546 = vtanh.pop %v1545
        %v1547 = vadd.f32 %v1546, 1.0
        %v1548 = vmul.f32 %v1540, %v1547
        %v1549 = vpack.c.bf16 %v1548, %v1548
        %v1550 = vld [vmem:[%s14] sm:$0xf]
        %v1551 = vld [vmem:[%s14 + $0x4] sm:$0xf]
        %v1552 = vld [vmem:[%s14 + $0x8] sm:$0xf]
        %v1553 = vld [vmem:[%s14 + $0xc] sm:$0xf]
        %v1554 = vld [vmem:[%s14 + $0x10] sm:$0xf]
        %v1555 = vld [vmem:[%s14 + $0x14] sm:$0xf]
        %v1556 = vld [vmem:[%s14 + $0x18] sm:$0xf]
        %v1557 = vld [vmem:[%s14 + $0x1c] sm:$0xf]
        %v1558 = vld [vmem:[%s14 + $0x20] sm:$0xf]
        %v1559 = vld [vmem:[%s14 + $0x24] sm:$0xf]
        %v1560 = vld [vmem:[%s14 + $0x28] sm:$0xf]
        %v1561 = vld [vmem:[%s14 + $0x2c] sm:$0xf]
        %v1562 = vld [vmem:[%s14 + $0x30] sm:$0xf]
        %v1563 = vld [vmem:[%s14 + $0x34] sm:$0xf]
        %v1564 = vld [vmem:[%s14 + $0x38] sm:$0xf]
        %v1565 = vld [vmem:[%s14 + $0x3c] sm:$0xf]
        %v1566 = vld [vmem:[%s15] sm:$0x1]
        %v1568 = vlaneseq
        %v1569 = vshrl.u32 %v1568, 7
        %v1570 = vsub.s32 0, %v1569
        %v1571 = vrot.slane %v1566, %v1570
        %v1589 = vunpack.c.l.b16 %v1550
        %v1590 = vunpack.c.l.b16 %v1551
        %v1591 = vunpack.c.l.b16 %v1552
        %v1592 = vunpack.c.l.b16 %v1553
        %v1593 = vunpack.c.l.b16 %v1554
        %v1594 = vunpack.c.l.b16 %v1555
        %v1595 = vunpack.c.l.b16 %v1556
        %v1596 = vunpack.c.l.b16 %v1557
        %v1597 = vunpack.c.l.b16 %v1558
        %v1598 = vunpack.c.l.b16 %v1559
        %v1599 = vunpack.c.l.b16 %v1560
        %v1600 = vunpack.c.l.b16 %v1561
        %v1601 = vunpack.c.l.b16 %v1562
        %v1602 = vunpack.c.l.b16 %v1563
        %v1603 = vunpack.c.l.b16 %v1564
        %v1604 = vunpack.c.l.b16 %v1565
        %v1605 = vpack.c.b16 %v1590, %v1589
        %v1606 = vpack.c.b16 %v1592, %v1591
        %v1607 = vpack.c.b16 %v1594, %v1593
        %v1608 = vpack.c.b16 %v1596, %v1595
        %v1609 = vpack.c.b16 %v1598, %v1597
        %v1610 = vpack.c.b16 %v1600, %v1599
        %v1611 = vpack.c.b16 %v1602, %v1601
        %v1612 = vpack.c.b16 %v1604, %v1603
        %1621 = vmatprep.subr.bf16.mxu0 0
        %1622 = vmatpush1.bf16.msra.mxu0 %v1605
        %1623 = vmatprep.subr.bf16.mxu0 0
        %1624 = vmatpush1.bf16.msra.mxu0 %v1606
        %1625 = vmatprep.subr.bf16.mxu0 0
        %1626 = vmatpush1.bf16.msra.mxu0 %v1607
        %1627 = vmatprep.subr.bf16.mxu0 0
        %1628 = vmatpush1.bf16.msra.mxu0 %v1608
        %1629 = vmatprep.subr.bf16.mxu0 0
        %1630 = vmatpush1.bf16.msra.mxu0 %v1609
        %1631 = vmatprep.subr.bf16.mxu0 0
        %1632 = vmatpush1.bf16.msra.mxu0 %v1610
        %1633 = vmatprep.subr.bf16.mxu0 0
        %1634 = vmatpush1.bf16.msra.mxu0 %v1611
        %1635 = vmatprep.subr.bf16.mxu0 0
        %1636 = vmatpush1.bf16.msra.mxu0 %v1612
        %1637 = vmatprep.subr.bf16.mxu0 0
        %1638 = vmatpush1.bf16.msra.mxu0 0
        %1639 = vmatprep.subr.bf16.mxu0 0
        %1640 = vmatpush1.bf16.msra.mxu0 0
        %1641 = vmatprep.subr.bf16.mxu0 0
        %1642 = vmatpush1.bf16.msra.mxu0 0
        %1643 = vmatprep.subr.bf16.mxu0 0
        %1644 = vmatpush1.bf16.msra.mxu0 0
        %1645 = vmatprep.subr.bf16.mxu0 0
        %1646 = vmatpush1.bf16.msra.mxu0 0
        %1647 = vmatprep.subr.bf16.mxu0 0
        %1648 = vmatpush1.bf16.msra.mxu0 0
        %1649 = vmatprep.subr.bf16.mxu0 0
        %1650 = vmatpush1.bf16.msra.mxu0 0
        %1651 = vmatprep.subr.bf16.mxu0 0
        %1652 = vmatpush1.bf16.msra.mxu0 0
        %1653 = vmatprep.mubr.bf16.mxu0 0
        %1654 = vmatmul.mubr.bf16.gmra.mrb[0].mxu0 %v1549
        %v1655 = vpop.f32.mrb[0].mxu0
        %v1656 = vadd.f32 %v1571, %v1655
        %v1657 = vpop.f32.mrb[0].mxu0
        %v1658 = vpop.f32.mrb[0].mxu0
        %v1659 = vpop.f32.mrb[0].mxu0
        %1660 = vdwg.mxu0
        %v1661 = vadd.f32 %v1443, %v1656
        %1662 = vst.msk [vmem:[%s585] sm:$0xff] %vm602, %v1661
        %s1663 = sand.u32 %s402, 1
        %s1664 = scalar_lea.sflag [#allocation4], %s1663
        %s1665 = sand.u32 %s402, 1
        %s1666 = smul.addr %s1665, 8
        %s1667 = scalar_lea.vmem [#allocation8], %s1666
        // Predicated region
        $region97: #{tpu_custom_call.1} parent=83 // pred_check
          %p1668 = pneg %p412
        $region98: #{tpu_custom_call.1} parent=83 // pred_check_branch
          %1670 = sbr.rel (%p1668) target = $region100
        $region99: #{tpu_custom_call.1} parent=83 // pred_region
          %s1672 = ssub.s32 128, 128
          %1673 = vsyncadd %s1664, %s1672
          %s1674 = sadd.s32 %s37, %s36
          %s1675 = smul.addr %s1674, 128
          %s1676 = scalar_lea.hbm %s16, %s1675
          %s1678 = sshll.u32 %s1667, 4
          %s1679 = int_to_ptr.vmem [resolvable:$true] %s1678
          %1681 = dma.vmem_to_hbm [thread:$0]  %s1679, 128, %s1676, %s1664
        $region100: #{tpu_custom_call.1} parent=83 // pred_fallthru
          _
      $region84: #{tpu_custom_call.1} parent=5 // pred_fallthru
        _
      %p1682 = scmp.le.s32.totalorder 2, %s27
      // Predicated region
      $region101: #{tpu_custom_call.1} parent=5 // pred_check
        %p1683 = pneg %p1682
      $region102: #{tpu_custom_call.1} parent=5 // pred_check_branch
        %1685 = sbr.rel (%p1683) target = $region104
      $region103: #{tpu_custom_call.1} parent=5 // pred_region
        %s1686 = ssub.s32 %s27, 2
        // Predicated region
        $region105: #{tpu_custom_call.1} parent=103 // pred_check
          %p1687 = pneg %p418
        $region106: #{tpu_custom_call.1} parent=103 // pred_check_branch
          %1689 = sbr.rel (%p1687) target = $region108
        $region107: #{tpu_custom_call.1} parent=103 // pred_region
          %s1690 = sand.u32 %s403, 1
          %s1691 = scalar_lea.sflag [#allocation4], %s1690
          %s1692 = sand.u32 %s403, 1
          %s1693 = smul.addr %s1692, 8
          %s1694 = scalar_lea.vmem [#allocation8], %s1693
          %1695 = dma.done %s1691, 128
        $region108: #{tpu_custom_call.1} parent=103 // pred_fallthru
          _
      $region104: #{tpu_custom_call.1} parent=5 // pred_fallthru
        _
    $region6: #{tpu_custom_call.1} parent=1 // loop_footer
      %s31 = sadd.s32 1, %s27
    $region7: #{tpu_custom_call.1} parent=1 // loop_footer_branch
      %26 = sbr.rel target = $region3
    $region8: #{tpu_custom_call.1} parent=1 // loop_exit
      _
    %1696 = vsyncpa [#allocation3], 1
    %s1697 = scalar_lea.sflag [#allocation3], 1
    %1698 = vsyncpa %s1697, 1
    %1699 = vsyncpa [#allocation6], 1
    %1700 = vsyncpa [#allocation4], 1
    %s1701 = scalar_lea.sflag [#allocation4], 1
    %1702 = vsyncpa %s1701, 1

</llo_original>
